<compile_context>
chip_gen: v7x
topology: tpu7x:2x2x1
jax: 0.10.0
libtpu: 0.0.40
codegen_flags: <defaults>
</compile_context>

<pallas_src>
import functools

import jax
import jax.numpy as jnp
from jax.experimental import pallas as pl
from jax.experimental.pallas import tpu as pltpu


def _mlp_kernel(x_ref, w1_ref, b1_ref, w2_ref, b2_ref, w3_ref, b3_ref, out_ref):
  """(block_rows, Din) tile -> (block_rows, Dout) tile, fully fused 3-layer MLP."""
  x = x_ref[...].astype(jnp.bfloat16)                          # bf16 MXU operand
  h = jnp.dot(x, w1_ref[...], preferred_element_type=jnp.float32) + b1_ref[...]
  h = jax.nn.silu(h)                                           # f32 bias/SiLU (VPU/EUP)
  h = jnp.dot(h.astype(jnp.bfloat16), w2_ref[...],
              preferred_element_type=jnp.float32) + b2_ref[...]
  h = jax.nn.silu(h)
  y = jnp.dot(h.astype(jnp.bfloat16), w3_ref[...],
              preferred_element_type=jnp.float32) + b3_ref[...]
  out_ref[...] = y.astype(out_ref.dtype)                       # lane-dense store


def _pick_block_rows(n):
  # Largest row-tile (best MXU occupancy, fewest ~0.35us grid steps) that still
  # leaves >= 2 grid steps so v7x's two TensorCores both get work.
  for br in (512, 256, 128):
    if n >= 2 * br:
      return br
  return 128


def _vmem_budget_bytes(block_rows, din, hid, dout, x_itemsize, out_itemsize,
                       single_buffer_weights):
  w_bytes = 2 * (din * hid + hid * hid + hid * dout)           # bf16 weights
  b_bytes = 4 * (2 * hid + dout)                               # f32 biases
  if not single_buffer_weights:                                # default double-buffered
    w_bytes *= 2
    b_bytes *= 2
  x_tiles = 2 * block_rows * din * x_itemsize                  # double-buffered x tile
  o_tiles = 2 * block_rows * dout * out_itemsize               # double-buffered out tile
  interm = 6 * block_rows * hid * 4                            # live f32/bf16 temporaries
  budget = w_bytes + b_bytes + x_tiles + o_tiles + interm + (8 << 20)   # headroom
  # Cap below v7x's 64 MiB physical VMEM; plenty on v5e/v6e (128 MiB).
  return int(min(max(budget, 16 << 20), 48 << 20))


def signal_resize_encoder_forward(x, params, *, block_rows=None, out_dtype=None,
                                  single_buffer_weights=True):
  """x: (..., input_dim) -> (..., output_dim), exactly like the PyTorch module."""
  w1, b1, w2, b2, w3, b3 = params
  din = x.shape[-1]
  hid = w1.shape[-1]
  dout = w3.shape[-1]
  lead = x.shape[:-1]
  out_dtype = x.dtype if out_dtype is None else jnp.dtype(out_dtype)
  out_itemsize = jnp.dtype(out_dtype).itemsize

  x2 = x.reshape(-1, din)
  n = x2.shape[0]
  if block_rows is None:
    block_rows = _pick_block_rows(n)
  grid = (pl.cdiv(n, block_rows),)   # ragged last block handled by masked writes

  # Cast weights to bf16 once (halves DMA + resident VMEM, native MXU dtype);
  # biases stay f32 for the f32 bias-add / SiLU path.
  w1b, w2b, w3b = (w.astype(jnp.bfloat16) for w in (w1, w2, w3))
  b1f, b2f, b3f = (b.astype(jnp.float32) for b in (b1, b2, b3))

  def const_spec(a):
    kwargs = {}
    if single_buffer_weights:
      # Grid-invariant operand: one resident buffer is enough.
      kwargs["pipeline_mode"] = pl.Buffered(1)
    return pl.BlockSpec(a.shape, lambda i: (0,) * a.ndim, **kwargs)

  flops = 2 * n * (din * hid + hid * hid + hid * dout)
  transcendentals = 2 * n * hid                                # one sigmoid per SiLU element
  bytes_accessed = (x2.size * x2.dtype.itemsize
                    + 2 * (din * hid + hid * hid + hid * dout)
                    + 4 * (2 * hid + dout)
                    + n * dout * out_itemsize)

  out = pl.pallas_call(
      _mlp_kernel,
      out_shape=jax.ShapeDtypeStruct((n, dout), out_dtype),
      grid=grid,
      in_specs=[
          pl.BlockSpec((block_rows, din), lambda i: (i, 0)),
          const_spec(w1b), const_spec(b1f),
          const_spec(w2b), const_spec(b2f),
          const_spec(w3b), const_spec(b3f),
      ],
      out_specs=pl.BlockSpec((block_rows, dout), lambda i: (i, 0)),
      compiler_params=pltpu.CompilerParams(
          dimension_semantics=("parallel",),
          vmem_limit_bytes=_vmem_budget_bytes(
              block_rows, din, hid, dout, x2.dtype.itemsize, out_itemsize,
              single_buffer_weights)),
      cost_estimate=pl.CostEstimate(
          flops=flops, transcendentals=transcendentals,
          bytes_accessed=bytes_accessed),
  )(x2, w1b, b1f, w2b, b2f, w3b, b3f)

  return out.reshape(*lead, dout)


def signal_resize_encoder_reference_f32(x, params):
  """Pure-JAX f32 reference of the PyTorch forward."""
  w1, b1, w2, b2, w3, b3 = params
  h = jax.nn.silu(x @ w1 + b1)
  h = jax.nn.silu(h @ w2 + b2)
  return h @ w3 + b3


def signal_resize_encoder_reference_bf16(x, params):
  """Same math as the kernel: bf16 MXU operands, f32 accumulation / elementwise."""
  w1, b1, w2, b2, w3, b3 = params
  bf = jnp.bfloat16
  h = jnp.dot(x.astype(bf), w1.astype(bf), preferred_element_type=jnp.float32) + b1
  h = jax.nn.silu(h)
  h = jnp.dot(h.astype(bf), w2.astype(bf), preferred_element_type=jnp.float32) + b2
  h = jax.nn.silu(h)
  return jnp.dot(h.astype(bf), w3.astype(bf), preferred_element_type=jnp.float32) + b3


def make_params(key, input_dim, hidden_dim, output_dim):
  """Deterministic synthetic weights. Layout: W (Din, Dout), b (1, Dout)."""
  ks = jax.random.split(key, 6)
  s1 = 1.0 / jnp.sqrt(input_dim)
  s2 = 1.0 / jnp.sqrt(hidden_dim)
  w1 = jax.random.normal(ks[0], (input_dim, hidden_dim), jnp.float32) * s1
  b1 = jax.random.normal(ks[1], (1, hidden_dim), jnp.float32) * 0.1
  w2 = jax.random.normal(ks[2], (hidden_dim, hidden_dim), jnp.float32) * s2
  b2 = jax.random.normal(ks[3], (1, hidden_dim), jnp.float32) * 0.1
  w3 = jax.random.normal(ks[4], (hidden_dim, output_dim), jnp.float32) * s2
  b3 = jax.random.normal(ks[5], (1, output_dim), jnp.float32) * 0.1
  return (w1, b1, w2, b2, w3, b3)


if __name__ == "__main__":
  key = jax.random.PRNGKey(0)
  kx, kp = jax.random.split(key)

  # Small shapes consistent with the module (real hidden_dim is 1024; scaled down
  # to keep the test light).
  B, SEQ, INPUT_DIM, HIDDEN_DIM, OUTPUT_DIM = 2, 128, 64, 256, 128

  x = jax.random.normal(kx, (B, SEQ, INPUT_DIM), jnp.float32)
  params = make_params(kp, INPUT_DIM, HIDDEN_DIM, OUTPUT_DIM)

  fwd = jax.jit(signal_resize_encoder_forward)
  try:
    out = jax.block_until_ready(fwd(x, params))
  except Exception:
    # Fallback for jax versions whose pallas_call does not accept
    # pipeline_mode=pl.Buffered(1): identical kernel with default double-buffering.
    fwd = jax.jit(functools.partial(signal_resize_encoder_forward,
                                    single_buffer_weights=False))
    out = jax.block_until_ready(fwd(x, params))

  assert out.shape == (B, SEQ, OUTPUT_DIM), out.shape

  # Kernel-logic check: against a reference using the exact same precision recipe.
  ref_bf16 = signal_resize_encoder_reference_bf16(x, params)
  err_bf16 = float(jnp.max(jnp.abs(out - ref_bf16)))
  assert jnp.allclose(out, ref_bf16, atol=1e-3, rtol=1e-3), err_bf16

  # Semantic check: against the full-f32 PyTorch-equivalent forward (tolerance
  # loosened only for the expected bf16-matmul rounding noise).
  ref_f32 = signal_resize_encoder_reference_f32(x, params)
  err_f32 = float(jnp.max(jnp.abs(out - ref_f32)))
  assert jnp.allclose(out, ref_f32, atol=5e-2, rtol=5e-2), err_f32

  print("KERNEL_OK")
</pallas_src>

<mosaic_0001>
module attributes {stable_mosaic.version = 11 : i64} {
  func.func @_mlp_kernel(%arg0: i32, %arg1: memref<128x64xf32, #tpu.memory_space<vmem>>, %arg2: memref<64x256xbf16, #tpu.memory_space<vmem>>, %arg3: memref<1x256xf32, #tpu.memory_space<vmem>>, %arg4: memref<256x256xbf16, #tpu.memory_space<vmem>>, %arg5: memref<1x256xf32, #tpu.memory_space<vmem>>, %arg6: memref<256x128xbf16, #tpu.memory_space<vmem>>, %arg7: memref<1x128xf32, #tpu.memory_space<vmem>>, %arg8: memref<128x128xf32, #tpu.memory_space<vmem>>) attributes {dimension_semantics = [#tpu.dimension_semantics<parallel>], iteration_bounds = array<i64: 2>, scalar_prefetch = 0 : i64, scratch_operands = 0 : i64, tpu.core_type = #tpu.core_type<tc>, window_params = [{transform_indices = @transform_0, window_bounds = array<i64: 128, 64>}, {pipeline_mode = #tpu.pipeline_mode<synchronous>, transform_indices = @transform_1, window_bounds = array<i64: 64, 256>}, {pipeline_mode = #tpu.pipeline_mode<synchronous>, transform_indices = @transform_2, window_bounds = array<i64: 1, 256>}, {pipeline_mode = #tpu.pipeline_mode<synchronous>, transform_indices = @transform_3, window_bounds = array<i64: 256, 256>}, {pipeline_mode = #tpu.pipeline_mode<synchronous>, transform_indices = @transform_4, window_bounds = array<i64: 1, 256>}, {pipeline_mode = #tpu.pipeline_mode<synchronous>, transform_indices = @transform_5, window_bounds = array<i64: 256, 128>}, {pipeline_mode = #tpu.pipeline_mode<synchronous>, transform_indices = @transform_6, window_bounds = array<i64: 1, 128>}, {transform_indices = @transform_7, window_bounds = array<i64: 128, 128>}]} {
    %c0 = arith.constant 0 : index
    %c0_0 = arith.constant 0 : index
    %0 = vector.load %arg1[%c0, %c0_0] : memref<128x64xf32, #tpu.memory_space<vmem>>, vector<128x64xf32>
    %1 = arith.truncf %0 : vector<128x64xf32> to vector<128x64xbf16>
    %c0_1 = arith.constant 0 : index
    %c0_2 = arith.constant 0 : index
    %2 = vector.load %arg2[%c0_1, %c0_2] : memref<64x256xbf16, #tpu.memory_space<vmem>>, vector<64x256xbf16>
    %cst = arith.constant dense<0.000000e+00> : vector<128x256xf32>
    %3 = tpu.matmul %1, %2, %cst {dimension_numbers = #tpu.dot_dimension_numbers<[1], [0], [0], [1], [0, 0, 1, 1], [], []>} : vector<128x64xbf16>, vector<64x256xbf16>, vector<128x256xf32> -> vector<128x256xf32>
    %c0_3 = arith.constant 0 : index
    %c0_4 = arith.constant 0 : index
    %4 = vector.load %arg3[%c0_3, %c0_4] : memref<1x256xf32, #tpu.memory_space<vmem>>, vector<1x256xf32>
    %5 = vector.broadcast %4 : vector<1x256xf32> to vector<128x256xf32>
    %6 = arith.addf %3, %5 : vector<128x256xf32>
    %7 = arith.negf %6 : vector<128x256xf32>
    %8 = math.exp %7 : vector<128x256xf32>
    %cst_5 = arith.constant 1.000000e+00 : f32
    %9 = vector.broadcast %cst_5 : f32 to vector<128x256xf32>
    %10 = arith.addf %9, %8 : vector<128x256xf32>
    %11 = arith.divf %9, %10 : vector<128x256xf32>
    %12 = arith.mulf %6, %11 : vector<128x256xf32>
    %13 = arith.truncf %12 : vector<128x256xf32> to vector<128x256xbf16>
    %c0_6 = arith.constant 0 : index
    %c0_7 = arith.constant 0 : index
    %14 = vector.load %arg4[%c0_6, %c0_7] : memref<256x256xbf16, #tpu.memory_space<vmem>>, vector<256x256xbf16>
    %cst_8 = arith.constant dense<0.000000e+00> : vector<128x256xf32>
    %15 = tpu.matmul %13, %14, %cst_8 {dimension_numbers = #tpu.dot_dimension_numbers<[1], [0], [0], [1], [0, 0, 1, 1], [], []>} : vector<128x256xbf16>, vector<256x256xbf16>, vector<128x256xf32> -> vector<128x256xf32>
    %c0_9 = arith.constant 0 : index
    %c0_10 = arith.constant 0 : index
    %16 = vector.load %arg5[%c0_9, %c0_10] : memref<1x256xf32, #tpu.memory_space<vmem>>, vector<1x256xf32>
    %17 = vector.broadcast %16 : vector<1x256xf32> to vector<128x256xf32>
    %18 = arith.addf %15, %17 : vector<128x256xf32>
    %19 = arith.negf %18 : vector<128x256xf32>
    %20 = math.exp %19 : vector<128x256xf32>
    %cst_11 = arith.constant 1.000000e+00 : f32
    %21 = vector.broadcast %cst_11 : f32 to vector<128x256xf32>
    %22 = arith.addf %21, %20 : vector<128x256xf32>
    %23 = arith.divf %21, %22 : vector<128x256xf32>
    %24 = arith.mulf %18, %23 : vector<128x256xf32>
    %25 = arith.truncf %24 : vector<128x256xf32> to vector<128x256xbf16>
    %c0_12 = arith.constant 0 : index
    %c0_13 = arith.constant 0 : index
    %26 = vector.load %arg6[%c0_12, %c0_13] : memref<256x128xbf16, #tpu.memory_space<vmem>>, vector<256x128xbf16>
    %cst_14 = arith.constant dense<0.000000e+00> : vector<128x128xf32>
    %27 = tpu.matmul %25, %26, %cst_14 {dimension_numbers = #tpu.dot_dimension_numbers<[1], [0], [0], [1], [0, 0, 1, 1], [], []>} : vector<128x256xbf16>, vector<256x128xbf16>, vector<128x128xf32> -> vector<128x128xf32>
    %c0_15 = arith.constant 0 : index
    %c0_16 = arith.constant 0 : index
    %28 = vector.load %arg7[%c0_15, %c0_16] : memref<1x128xf32, #tpu.memory_space<vmem>>, vector<1x128xf32>
    %29 = vector.broadcast %28 : vector<1x128xf32> to vector<128x128xf32>
    %30 = arith.addf %27, %29 : vector<128x128xf32>
    %c0_17 = arith.constant 0 : index
    %c0_18 = arith.constant 0 : index
    %31 = vector.load %arg8[%c0_17, %c0_18] : memref<128x128xf32, #tpu.memory_space<vmem>>, vector<128x128xf32>
    tpu.vector_store %arg8[%c0_17, %c0_18], %30 {strides = array<i32>} : memref<128x128xf32, #tpu.memory_space<vmem>>, vector<128x128xf32>,
    return
  }
  func.func @transform_0(%arg0: i32) -> (i32, i32) {
    %c0_i32 = arith.constant 0 : i32
    %c0_i32_0 = arith.constant 0 : i32
    return %arg0, %c0_i32 : i32, i32
  }
  func.func @transform_1(%arg0: i32) -> (i32, i32) {
    %c0_i32 = arith.constant 0 : i32
    %c0_i32_0 = arith.constant 0 : i32
    %c0_i32_1 = arith.constant 0 : i32
    return %c0_i32, %c0_i32_0 : i32, i32
  }
  func.func @transform_2(%arg0: i32) -> (i32, i32) {
    %c0_i32 = arith.constant 0 : i32
    %c0_i32_0 = arith.constant 0 : i32
    %c0_i32_1 = arith.constant 0 : i32
    return %c0_i32, %c0_i32_0 : i32, i32
  }
  func.func @transform_3(%arg0: i32) -> (i32, i32) {
    %c0_i32 = arith.constant 0 : i32
    %c0_i32_0 = arith.constant 0 : i32
    %c0_i32_1 = arith.constant 0 : i32
    return %c0_i32, %c0_i32_0 : i32, i32
  }
  func.func @transform_4(%arg0: i32) -> (i32, i32) {
    %c0_i32 = arith.constant 0 : i32
    %c0_i32_0 = arith.constant 0 : i32
    %c0_i32_1 = arith.constant 0 : i32
    return %c0_i32, %c0_i32_0 : i32, i32
  }
  func.func @transform_5(%arg0: i32) -> (i32, i32) {
    %c0_i32 = arith.constant 0 : i32
    %c0_i32_0 = arith.constant 0 : i32
    %c0_i32_1 = arith.constant 0 : i32
    return %c0_i32, %c0_i32_0 : i32, i32
  }
  func.func @transform_6(%arg0: i32) -> (i32, i32) {
    %c0_i32 = arith.constant 0 : i32
    %c0_i32_0 = arith.constant 0 : i32
    %c0_i32_1 = arith.constant 0 : i32
    return %c0_i32, %c0_i32_0 : i32, i32
  }
  func.func @transform_7(%arg0: i32) -> (i32, i32) {
    %c0_i32 = arith.constant 0 : i32
    %c0_i32_0 = arith.constant 0 : i32
    return %arg0, %c0_i32 : i32, i32
  }
}

module attributes {stable_mosaic.version = 11 : i64} {
  func.func @_mlp_kernel(%arg0: i32, %arg1: memref<128x64xf32, #tpu.memory_space<vmem>>, %arg2: memref<64x256xbf16, #tpu.memory_space<vmem>>, %arg3: memref<1x256xf32, #tpu.memory_space<vmem>>, %arg4: memref<256x256xbf16, #tpu.memory_space<vmem>>, %arg5: memref<1x256xf32, #tpu.memory_space<vmem>>, %arg6: memref<256x128xbf16, #tpu.memory_space<vmem>>, %arg7: memref<1x128xf32, #tpu.memory_space<vmem>>, %arg8: memref<128x128xf32, #tpu.memory_space<vmem>>) attributes {dimension_semantics = [#tpu.dimension_semantics<parallel>], iteration_bounds = array<i64: 2>, scalar_prefetch = 0 : i64, scratch_operands = 0 : i64, tpu.core_type = #tpu.core_type<tc>, window_params = [{transform_indices = @transform_0, window_bounds = array<i64: 128, 64>}, {pipeline_mode = #tpu.pipeline_mode<synchronous>, transform_indices = @transform_1, window_bounds = array<i64: 64, 256>}, {pipeline_mode = #tpu.pipeline_mode<synchronous>, transform_indices = @transform_2, window_bounds = array<i64: 1, 256>}, {pipeline_mode = #tpu.pipeline_mode<synchronous>, transform_indices = @transform_3, window_bounds = array<i64: 256, 256>}, {pipeline_mode = #tpu.pipeline_mode<synchronous>, transform_indices = @transform_4, window_bounds = array<i64: 1, 256>}, {pipeline_mode = #tpu.pipeline_mode<synchronous>, transform_indices = @transform_5, window_bounds = array<i64: 256, 128>}, {pipeline_mode = #tpu.pipeline_mode<synchronous>, transform_indices = @transform_6, window_bounds = array<i64: 1, 128>}, {transform_indices = @transform_7, window_bounds = array<i64: 128, 128>}]} {
    %c0 = arith.constant 0 : index
    %c0_0 = arith.constant 0 : index
    %0 = vector.load %arg1[%c0, %c0_0] : memref<128x64xf32, #tpu.memory_space<vmem>>, vector<128x64xf32>
    %1 = arith.truncf %0 : vector<128x64xf32> to vector<128x64xbf16>
    %c0_1 = arith.constant 0 : index
    %c0_2 = arith.constant 0 : index
    %2 = vector.load %arg2[%c0_1, %c0_2] : memref<64x256xbf16, #tpu.memory_space<vmem>>, vector<64x256xbf16>
    %cst = arith.constant dense<0.000000e+00> : vector<128x256xf32>
    %3 = tpu.matmul %1, %2, %cst {dimension_numbers = #tpu.dot_dimension_numbers<[1], [0], [0], [1], [0, 0, 1, 1], [], []>} : vector<128x64xbf16>, vector<64x256xbf16>, vector<128x256xf32> -> vector<128x256xf32>
    %c0_3 = arith.constant 0 : index
    %c0_4 = arith.constant 0 : index
    %4 = vector.load %arg3[%c0_3, %c0_4] : memref<1x256xf32, #tpu.memory_space<vmem>>, vector<1x256xf32>
    %5 = vector.broadcast %4 : vector<1x256xf32> to vector<128x256xf32>
    %6 = arith.addf %3, %5 : vector<128x256xf32>
    %7 = arith.negf %6 : vector<128x256xf32>
    %8 = math.exp %7 : vector<128x256xf32>
    %cst_5 = arith.constant 1.000000e+00 : f32
    %9 = vector.broadcast %cst_5 : f32 to vector<128x256xf32>
    %10 = arith.addf %9, %8 : vector<128x256xf32>
    %11 = arith.divf %9, %10 : vector<128x256xf32>
    %12 = arith.mulf %6, %11 : vector<128x256xf32>
    %13 = arith.truncf %12 : vector<128x256xf32> to vector<128x256xbf16>
    %c0_6 = arith.constant 0 : index
    %c0_7 = arith.constant 0 : index
    %14 = vector.load %arg4[%c0_6, %c0_7] : memref<256x256xbf16, #tpu.memory_space<vmem>>, vector<256x256xbf16>
    %cst_8 = arith.constant dense<0.000000e+00> : vector<128x256xf32>
    %15 = tpu.matmul %13, %14, %cst_8 {dimension_numbers = #tpu.dot_dimension_numbers<[1], [0], [0], [1], [0, 0, 1, 1], [], []>} : vector<128x256xbf16>, vector<256x256xbf16>, vector<128x256xf32> -> vector<128x256xf32>
    %c0_9 = arith.constant 0 : index
    %c0_10 = arith.constant 0 : index
    %16 = vector.load %arg5[%c0_9, %c0_10] : memref<1x256xf32, #tpu.memory_space<vmem>>, vector<1x256xf32>
    %17 = vector.broadcast %16 : vector<1x256xf32> to vector<128x256xf32>
    %18 = arith.addf %15, %17 : vector<128x256xf32>
    %19 = arith.negf %18 : vector<128x256xf32>
    %20 = math.exp %19 : vector<128x256xf32>
    %cst_11 = arith.constant 1.000000e+00 : f32
    %21 = vector.broadcast %cst_11 : f32 to vector<128x256xf32>
    %22 = arith.addf %21, %20 : vector<128x256xf32>
    %23 = arith.divf %21, %22 : vector<128x256xf32>
    %24 = arith.mulf %18, %23 : vector<128x256xf32>
    %25 = arith.truncf %24 : vector<128x256xf32> to vector<128x256xbf16>
    %c0_12 = arith.constant 0 : index
    %c0_13 = arith.constant 0 : index
    %26 = vector.load %arg6[%c0_12, %c0_13] : memref<256x128xbf16, #tpu.memory_space<vmem>>, vector<256x128xbf16>
    %cst_14 = arith.constant dense<0.000000e+00> : vector<128x128xf32>
    %27 = tpu.matmul %25, %26, %cst_14 {dimension_numbers = #tpu.dot_dimension_numbers<[1], [0], [0], [1], [0, 0, 1, 1], [], []>} : vector<128x256xbf16>, vector<256x128xbf16>, vector<128x128xf32> -> vector<128x128xf32>
    %c0_15 = arith.constant 0 : index
    %c0_16 = arith.constant 0 : index
    %28 = vector.load %arg7[%c0_15, %c0_16] : memref<1x128xf32, #tpu.memory_space<vmem>>, vector<1x128xf32>
    %29 = vector.broadcast %28 : vector<1x128xf32> to vector<128x128xf32>
    %30 = arith.addf %27, %29 : vector<128x128xf32>
    %c0_17 = arith.constant 0 : index
    %c0_18 = arith.constant 0 : index
    %31 = vector.load %arg8[%c0_17, %c0_18] : memref<128x128xf32, #tpu.memory_space<vmem>>, vector<128x128xf32>
    tpu.vector_store %arg8[%c0_17, %c0_18], %30 {strides = array<i32>} : memref<128x128xf32, #tpu.memory_space<vmem>>, vector<128x128xf32>,
    return
  }
  func.func @transform_0(%arg0: i32) -> (i32, i32) {
    %c0_i32 = arith.constant 0 : i32
    %c0_i32_0 = arith.constant 0 : i32
    return %arg0, %c0_i32 : i32, i32
  }
  func.func @transform_1(%arg0: i32) -> (i32, i32) {
    %c0_i32 = arith.constant 0 : i32
    %c0_i32_0 = arith.constant 0 : i32
    %c0_i32_1 = arith.constant 0 : i32
    return %c0_i32, %c0_i32_0 : i32, i32
  }
  func.func @transform_2(%arg0: i32) -> (i32, i32) {
    %c0_i32 = arith.constant 0 : i32
    %c0_i32_0 = arith.constant 0 : i32
    %c0_i32_1 = arith.constant 0 : i32
    return %c0_i32, %c0_i32_0 : i32, i32
  }
  func.func @transform_3(%arg0: i32) -> (i32, i32) {
    %c0_i32 = arith.constant 0 : i32
    %c0_i32_0 = arith.constant 0 : i32
    %c0_i32_1 = arith.constant 0 : i32
    return %c0_i32, %c0_i32_0 : i32, i32
  }
  func.func @transform_4(%arg0: i32) -> (i32, i32) {
    %c0_i32 = arith.constant 0 : i32
    %c0_i32_0 = arith.constant 0 : i32
    %c0_i32_1 = arith.constant 0 : i32
    return %c0_i32, %c0_i32_0 : i32, i32
  }
  func.func @transform_5(%arg0: i32) -> (i32, i32) {
    %c0_i32 = arith.constant 0 : i32
    %c0_i32_0 = arith.constant 0 : i32
    %c0_i32_1 = arith.constant 0 : i32
    return %c0_i32, %c0_i32_0 : i32, i32
  }
  func.func @transform_6(%arg0: i32) -> (i32, i32) {
    %c0_i32 = arith.constant 0 : i32
    %c0_i32_0 = arith.constant 0 : i32
    %c0_i32_1 = arith.constant 0 : i32
    return %c0_i32, %c0_i32_0 : i32, i32
  }
  func.func @transform_7(%arg0: i32) -> (i32, i32) {
    %c0_i32 = arith.constant 0 : i32
    %c0_i32_0 = arith.constant 0 : i32
    return %arg0, %c0_i32 : i32, i32
  }
}

</mosaic_0001>

<llo_original>
// kernel: signal_resize_encoder_forward.1
$region0: #{signal_resize_encoder_forward.1}
  #allocation0 [shape = 'u32[]', space=smem, size = 0x4, offset = 0x4, fixed_abs, tag = 'smem constant byte address 0x4 - core index']
  #allocation1 [shape = 'u32[144,128]{1,0:T(1,128)}', space=vmem, size = 0x12000, scoped, tag = 'internal scratch']
  %s0 = inlined_call_operand.vmem [shape: f32[256,64], index: 0, kind: input, shape index: {}]
  %s1 = inlined_call_operand.vmem [shape: bf16[64,256], index: 1, kind: input, shape index: {}]
  %s2 = inlined_call_operand.vmem [shape: f32[1,256], index: 2, kind: input, shape index: {}]
  %s3 = inlined_call_operand.vmem [shape: bf16[256,256], index: 3, kind: input, shape index: {}]
  %s4 = inlined_call_operand.vmem [shape: f32[1,256], index: 4, kind: input, shape index: {}]
  %s5 = inlined_call_operand.vmem [shape: bf16[256,128], index: 5, kind: input, shape index: {}]
  %s6 = inlined_call_operand.vmem [shape: f32[1,128], index: 6, kind: input, shape index: {}]
  %s7 = inlined_call_operand.hbm [shape: f32[256,128], index: 7, kind: output, shape index: {}]
  %s8 = sld [smem:[#allocation0]]
  $region61: #{signal_resize_encoder_forward.1} parent=0
    _
  %s10 = ssub.s32 1, %s8
  %s11 = scalar_select 0, %s10, %s8
  $region1: #{signal_resize_encoder_forward.1} parent=0
    #allocation2 [shape = 'u8[131072]{0}', space=vmem, size = 0x20000, scoped, tag = 'output window, operand 0']
    #allocation3 [shape = 's32[2]{0}', space=sflag, size = 0x8, scoped, tag = 'scoped memory for signal_resize_encoder_forward.1']
    %12 = vsyncpa [#allocation3], 0
    %s13 = scalar_lea.sflag [#allocation3], 1
    %14 = vsyncpa %s13, 0
    loop: start=0, step=1, limit=4
    $region2: #{signal_resize_encoder_forward.1} parent=1 // loop_pre_header
      _
    $region3: #{signal_resize_encoder_forward.1} parent=1 // loop_header
      %s16 = sphi 0, %s20
      %p17 = scmp.ge.s32.totalorder %s16, 4
      %s26 = sphi 0, %s28
      %s29 = sphi 0, %s26
      %s30 = sphi 0, %s29
      %s46 = sphi 0, %s30
      %s50 = sphi 0, %s50
      %s52 = sphi 0, %s50
      %s53 = sphi 0, %s52
      %s67 = sphi 0, %s53
      %s71 = sphi 0, %s71
      %s73 = sphi 0, %s71
      %s74 = sphi 0, %s73
      %s88 = sphi 0, %s74
      %s92 = sphi 0, %s92
      %s94 = sphi 0, %s92
      %s95 = sphi 0, %s94
      %s109 = sphi 0, %s95
      %s113 = sphi 0, %s113
      %s115 = sphi 0, %s113
      %s116 = sphi 0, %s115
      %s130 = sphi 0, %s116
      %s134 = sphi 0, %s134
      %s136 = sphi 0, %s134
      %s137 = sphi 0, %s136
      %s151 = sphi 0, %s137
      %s155 = sphi 0, %s155
      %s157 = sphi 0, %s155
      %s158 = sphi 0, %s157
      %s172 = sphi 0, %s158
      %s178 = sphi 0, %s180
      %s181 = sphi 0, %s178
      %s182 = sphi 0, %s181
      %s198 = sphi 0, %s182
    $region4: #{signal_resize_encoder_forward.1} parent=1 // loop_header_branch
      %19 = sbr.rel (%p17) target = $region8
    $region5: #{signal_resize_encoder_forward.1} parent=1 // loop_body
      %s21 = ssub.s32 %s16, 1
      %s22 = ssub.s32 %s16, 2
      %s23 = sadd.s32 %s16, 1
      %s24 = ssub.s32 %s16, %s23
      %p25 = scmp.eq.s32.totalorder %s24, 0
      %s27 = sadd.s32 %s26, 1
      %s28 = scalar_select %p25, %s26, %s27
      %p31 = pneg %p25
      %p32 = scmp.eq.s32.totalorder %s16, 1
      %p33 = por %p31, %p32
      %p34 = scmp.ne.s32.totalorder %s26, %s29
      %p35 = scmp.eq.s32.totalorder %s16, 0
      %p36 = por %p34, %p35
      %p37 = scmp.ne.s32.totalorder %s26, %s29
      %p38 = scmp.eq.s32.totalorder %s21, 1
      %p39 = por %p37, %p38
      %p40 = scmp.ne.s32.totalorder %s29, %s30
      %p41 = scmp.eq.s32.totalorder %s21, 0
      %p42 = por %p40, %p41
      %p43 = scmp.ne.s32.totalorder %s29, %s30
      %p44 = scmp.eq.s32.totalorder %s22, 1
      %p45 = por %p43, %p44
      %p47 = scmp.ne.s32.totalorder %s30, %s46
      %p48 = scmp.eq.s32.totalorder %s22, 0
      %p49 = por %p47, %p48
      %s51 = sadd.s32 %s50, 1
      %p54 = scmp.eq.s32.totalorder %s16, 1
      %p55 = scmp.ne.s32.totalorder %s50, %s52
      %p56 = scmp.eq.s32.totalorder %s16, 0
      %p57 = por %p55, %p56
      %p58 = scmp.ne.s32.totalorder %s50, %s52
      %p59 = scmp.eq.s32.totalorder %s21, 1
      %p60 = por %p58, %p59
      %p61 = scmp.ne.s32.totalorder %s52, %s53
      %p62 = scmp.eq.s32.totalorder %s21, 0
      %p63 = por %p61, %p62
      %p64 = scmp.ne.s32.totalorder %s52, %s53
      %p65 = scmp.eq.s32.totalorder %s22, 1
      %p66 = por %p64, %p65
      %p68 = scmp.ne.s32.totalorder %s53, %s67
      %p69 = scmp.eq.s32.totalorder %s22, 0
      %p70 = por %p68, %p69
      %s72 = sadd.s32 %s71, 1
      %p75 = scmp.eq.s32.totalorder %s16, 1
      %p76 = scmp.ne.s32.totalorder %s71, %s73
      %p77 = scmp.eq.s32.totalorder %s16, 0
      %p78 = por %p76, %p77
      %p79 = scmp.ne.s32.totalorder %s71, %s73
      %p80 = scmp.eq.s32.totalorder %s21, 1
      %p81 = por %p79, %p80
      %p82 = scmp.ne.s32.totalorder %s73, %s74
      %p83 = scmp.eq.s32.totalorder %s21, 0
      %p84 = por %p82, %p83
      %p85 = scmp.ne.s32.totalorder %s73, %s74
      %p86 = scmp.eq.s32.totalorder %s22, 1
      %p87 = por %p85, %p86
      %p89 = scmp.ne.s32.totalorder %s74, %s88
      %p90 = scmp.eq.s32.totalorder %s22, 0
      %p91 = por %p89, %p90
      %s93 = sadd.s32 %s92, 1
      %p96 = scmp.eq.s32.totalorder %s16, 1
      %p97 = scmp.ne.s32.totalorder %s92, %s94
      %p98 = scmp.eq.s32.totalorder %s16, 0
      %p99 = por %p97, %p98
      %p100 = scmp.ne.s32.totalorder %s92, %s94
      %p101 = scmp.eq.s32.totalorder %s21, 1
      %p102 = por %p100, %p101
      %p103 = scmp.ne.s32.totalorder %s94, %s95
      %p104 = scmp.eq.s32.totalorder %s21, 0
      %p105 = por %p103, %p104
      %p106 = scmp.ne.s32.totalorder %s94, %s95
      %p107 = scmp.eq.s32.totalorder %s22, 1
      %p108 = por %p106, %p107
      %p110 = scmp.ne.s32.totalorder %s95, %s109
      %p111 = scmp.eq.s32.totalorder %s22, 0
      %p112 = por %p110, %p111
      %s114 = sadd.s32 %s113, 1
      %p117 = scmp.eq.s32.totalorder %s16, 1
      %p118 = scmp.ne.s32.totalorder %s113, %s115
      %p119 = scmp.eq.s32.totalorder %s16, 0
      %p120 = por %p118, %p119
      %p121 = scmp.ne.s32.totalorder %s113, %s115
      %p122 = scmp.eq.s32.totalorder %s21, 1
      %p123 = por %p121, %p122
      %p124 = scmp.ne.s32.totalorder %s115, %s116
      %p125 = scmp.eq.s32.totalorder %s21, 0
      %p126 = por %p124, %p125
      %p127 = scmp.ne.s32.totalorder %s115, %s116
      %p128 = scmp.eq.s32.totalorder %s22, 1
      %p129 = por %p127, %p128
      %p131 = scmp.ne.s32.totalorder %s116, %s130
      %p132 = scmp.eq.s32.totalorder %s22, 0
      %p133 = por %p131, %p132
      %s135 = sadd.s32 %s134, 1
      %p138 = scmp.eq.s32.totalorder %s16, 1
      %p139 = scmp.ne.s32.totalorder %s134, %s136
      %p140 = scmp.eq.s32.totalorder %s16, 0
      %p141 = por %p139, %p140
      %p142 = scmp.ne.s32.totalorder %s134, %s136
      %p143 = scmp.eq.s32.totalorder %s21, 1
      %p144 = por %p142, %p143
      %p145 = scmp.ne.s32.totalorder %s136, %s137
      %p146 = scmp.eq.s32.totalorder %s21, 0
      %p147 = por %p145, %p146
      %p148 = scmp.ne.s32.totalorder %s136, %s137
      %p149 = scmp.eq.s32.totalorder %s22, 1
      %p150 = por %p148, %p149
      %p152 = scmp.ne.s32.totalorder %s137, %s151
      %p153 = scmp.eq.s32.totalorder %s22, 0
      %p154 = por %p152, %p153
      %s156 = sadd.s32 %s155, 1
      %p159 = scmp.eq.s32.totalorder %s16, 1
      %p160 = scmp.ne.s32.totalorder %s155, %s157
      %p161 = scmp.eq.s32.totalorder %s16, 0
      %p162 = por %p160, %p161
      %p163 = scmp.ne.s32.totalorder %s155, %s157
      %p164 = scmp.eq.s32.totalorder %s21, 1
      %p165 = por %p163, %p164
      %p166 = scmp.ne.s32.totalorder %s157, %s158
      %p167 = scmp.eq.s32.totalorder %s21, 0
      %p168 = por %p166, %p167
      %p169 = scmp.ne.s32.totalorder %s157, %s158
      %p170 = scmp.eq.s32.totalorder %s22, 1
      %p171 = por %p169, %p170
      %p173 = scmp.ne.s32.totalorder %s158, %s172
      %p174 = scmp.eq.s32.totalorder %s22, 0
      %p175 = por %p173, %p174
      %s176 = ssub.s32 %s16, %s23
      %p177 = scmp.eq.s32.totalorder %s176, 0
      %s179 = sadd.s32 %s178, 1
      %s180 = scalar_select %p177, %s178, %s179
      %p183 = pneg %p177
      %p184 = scmp.eq.s32.totalorder %s16, 1
      %p185 = por %p183, %p184
      %p186 = scmp.ne.s32.totalorder %s178, %s181
      %p187 = scmp.eq.s32.totalorder %s16, 0
      %p188 = por %p186, %p187
      %p189 = scmp.ne.s32.totalorder %s178, %s181
      %p190 = scmp.eq.s32.totalorder %s21, 1
      %p191 = por %p189, %p190
      %p192 = scmp.ne.s32.totalorder %s181, %s182
      %p193 = scmp.eq.s32.totalorder %s21, 0
      %p194 = por %p192, %p193
      %p195 = scmp.ne.s32.totalorder %s181, %s182
      %p196 = scmp.eq.s32.totalorder %s22, 1
      %p197 = por %p195, %p196
      %p199 = scmp.ne.s32.totalorder %s182, %s198
      %p200 = scmp.eq.s32.totalorder %s22, 0
      %p201 = por %p199, %p200
      %p202 = scmp.le.s32.totalorder 1, %s16
      %p203 = scmp.lt.s32.totalorder %s16, 3
      %p204 = pnand %p202, %p203
      %p205 = pneg %p204
      // Predicated region
      $region9: #{signal_resize_encoder_forward.1} parent=5 // pred_check
        _
      $region10: #{signal_resize_encoder_forward.1} parent=5 // pred_check_branch
        %207 = sbr.rel (%p204) target = $region12
      $region11: #{signal_resize_encoder_forward.1} parent=5 // pred_region
        %s208 = ssub.s32 %s16, 1
        // Predicated region
        $region13: #{signal_resize_encoder_forward.1} parent=11 // pred_check
          %p209 = pneg %p63
        $region14: #{signal_resize_encoder_forward.1} parent=11 // pred_check_branch
          %211 = sbr.rel (%p209) target = $region16
        $region15: #{signal_resize_encoder_forward.1} parent=11 // pred_region
          _
        $region16: #{signal_resize_encoder_forward.1} parent=11 // pred_fallthru
          _
        // Predicated region
        $region17: #{signal_resize_encoder_forward.1} parent=11 // pred_check
          %p212 = pneg %p84
        $region18: #{signal_resize_encoder_forward.1} parent=11 // pred_check_branch
          %214 = sbr.rel (%p212) target = $region20
        $region19: #{signal_resize_encoder_forward.1} parent=11 // pred_region
          _
        $region20: #{signal_resize_encoder_forward.1} parent=11 // pred_fallthru
          _
        // Predicated region
        $region21: #{signal_resize_encoder_forward.1} parent=11 // pred_check
          %p215 = pneg %p105
        $region22: #{signal_resize_encoder_forward.1} parent=11 // pred_check_branch
          %217 = sbr.rel (%p215) target = $region24
        $region23: #{signal_resize_encoder_forward.1} parent=11 // pred_region
          _
        $region24: #{signal_resize_encoder_forward.1} parent=11 // pred_fallthru
          _
        // Predicated region
        $region25: #{signal_resize_encoder_forward.1} parent=11 // pred_check
          %p218 = pneg %p126
        $region26: #{signal_resize_encoder_forward.1} parent=11 // pred_check_branch
          %220 = sbr.rel (%p218) target = $region28
        $region27: #{signal_resize_encoder_forward.1} parent=11 // pred_region
          _
        $region28: #{signal_resize_encoder_forward.1} parent=11 // pred_fallthru
          _
        // Predicated region
        $region29: #{signal_resize_encoder_forward.1} parent=11 // pred_check
          %p221 = pneg %p147
        $region30: #{signal_resize_encoder_forward.1} parent=11 // pred_check_branch
          %223 = sbr.rel (%p221) target = $region32
        $region31: #{signal_resize_encoder_forward.1} parent=11 // pred_region
          _
        $region32: #{signal_resize_encoder_forward.1} parent=11 // pred_fallthru
          _
        // Predicated region
        $region33: #{signal_resize_encoder_forward.1} parent=11 // pred_check
          %p224 = pneg %p168
        $region34: #{signal_resize_encoder_forward.1} parent=11 // pred_check_branch
          %226 = sbr.rel (%p224) target = $region36
        $region35: #{signal_resize_encoder_forward.1} parent=11 // pred_region
          _
        $region36: #{signal_resize_encoder_forward.1} parent=11 // pred_fallthru
          _
      $region12: #{signal_resize_encoder_forward.1} parent=5 // pred_fallthru
        _
      %p227 = scmp.lt.s32.totalorder %s16, 2
      // Predicated region
      $region37: #{signal_resize_encoder_forward.1} parent=5 // pred_check
        %p228 = pneg %p227
      $region38: #{signal_resize_encoder_forward.1} parent=5 // pred_check_branch
        %230 = sbr.rel (%p228) target = $region40
      $region39: #{signal_resize_encoder_forward.1} parent=5 // pred_region
        // Predicated region
        $region41: #{signal_resize_encoder_forward.1} parent=39 // pred_check
          %p231 = pneg %p36
        $region42: #{signal_resize_encoder_forward.1} parent=39 // pred_check_branch
          %233 = sbr.rel (%p231) target = $region44
        $region43: #{signal_resize_encoder_forward.1} parent=39 // pred_region
          %s234 = smul.u32 16, %s16
          %p235 = scmp.lt.s32.totalorder %s234, 31
          %s236 = scalar_select %p235, %s234, 31
          %s237 = smul.addr %s236, 8
          %s238 = scalar_lea.vmem %s0, %s237
          %s239 = smul.u32 16, %s16
        $region44: #{signal_resize_encoder_forward.1} parent=39 // pred_fallthru
          _
      $region40: #{signal_resize_encoder_forward.1} parent=5 // pred_fallthru
        _
      %p240 = scmp.le.s32.totalorder 1, %s16
      %p241 = scmp.lt.s32.totalorder %s16, 3
      %p242 = pnand %p240, %p241
      %p243 = pneg %p242
      // Predicated region
      $region45: #{signal_resize_encoder_forward.1} parent=5 // pred_check
        _
      $region46: #{signal_resize_encoder_forward.1} parent=5 // pred_check_branch
        %245 = sbr.rel (%p242) target = $region48
      $region47: #{signal_resize_encoder_forward.1} parent=5 // pred_region
        %s246 = ssub.s32 %s16, 1
        %s247 = smul.u32 16, %s21
        %p248 = scmp.lt.s32.totalorder %s247, 31
        %s249 = scalar_select %p248, %s247, 31
        %s250 = smul.addr %s249, 8
        %s251 = scalar_lea.vmem %s0, %s250
        %p252 = pneg %p42
        %p253 = pneg %p39
        %p254 = pneg %p63
        %p255 = pneg %p60
        %p256 = pneg %p84
        %p257 = pneg %p81
        %p258 = pneg %p105
        %p259 = pneg %p102
        %p260 = pneg %p126
        %p261 = pneg %p123
        %p262 = pneg %p147
        %p263 = pneg %p144
        %p264 = pneg %p168
        %p265 = pneg %p165
        %p266 = pneg %p194
        %p267 = pneg %p191
        %s268 = sand.u32 %s181, 1
        %s269 = scalar_lea.sflag [#allocation3], %s268
        %s270 = sand.u32 %s181, 1
        %s271 = smul.addr %s270, 128
        %s272 = scalar_lea.vmem [#allocation2], %s271
        %s273 = smul.u32 16, %s21
        %p274 = scmp.lt.s32.totalorder %s273, 31
        %s275 = scalar_select %p274, %s273, 31
        %s276 = smul.addr %s275, 8
        %s277 = scalar_lea.vmem %s0, %s276
        %s278 = smul.u32 16, %s21
        %s279 = smul.u32 16, %s21
        %v281 = vld [vmem:[%s277] sm:$0xff]
        %v282 = vld [vmem:[%s277 + $0x8] sm:$0xff]
        %v283 = vld [vmem:[%s277 + $0x10] sm:$0xff]
        %v284 = vld [vmem:[%s277 + $0x18] sm:$0xff]
        %v285 = vld [vmem:[%s277 + $0x20] sm:$0xff]
        %v286 = vld [vmem:[%s277 + $0x28] sm:$0xff]
        %v287 = vld [vmem:[%s277 + $0x30] sm:$0xff]
        %v288 = vld [vmem:[%s277 + $0x38] sm:$0xff]
        %v289 = vld [vmem:[%s277 + $0x40] sm:$0xff]
        %v290 = vld [vmem:[%s277 + $0x48] sm:$0xff]
        %v291 = vld [vmem:[%s277 + $0x50] sm:$0xff]
        %v292 = vld [vmem:[%s277 + $0x58] sm:$0xff]
        %v293 = vld [vmem:[%s277 + $0x60] sm:$0xff]
        %v294 = vld [vmem:[%s277 + $0x68] sm:$0xff]
        %v295 = vld [vmem:[%s277 + $0x70] sm:$0xff]
        %v296 = vld [vmem:[%s277 + $0x78] sm:$0xff]
        %v297 = vpack.c.bf16 %v282, %v281
        %v298 = vpack.c.bf16 %v284, %v283
        %v299 = vpack.c.bf16 %v286, %v285
        %v300 = vpack.c.bf16 %v288, %v287
        %v301 = vpack.c.bf16 %v290, %v289
        %v302 = vpack.c.bf16 %v292, %v291
        %v303 = vpack.c.bf16 %v294, %v293
        %v304 = vpack.c.bf16 %v296, %v295
        %v305 = vld [vmem:[%s1] sm:$0xff]
        %v306 = vld [vmem:[%s1 + $0x8] sm:$0xff]
        %v307 = vld [vmem:[%s1 + $0x10] sm:$0xff]
        %v308 = vld [vmem:[%s1 + $0x18] sm:$0xff]
        %v309 = vld [vmem:[%s1 + $0x20] sm:$0xff]
        %v310 = vld [vmem:[%s1 + $0x28] sm:$0xff]
        %v311 = vld [vmem:[%s1 + $0x30] sm:$0xff]
        %v312 = vld [vmem:[%s1 + $0x38] sm:$0xff]
        %v313 = vld [vmem:[%s2] sm:$0x3]
        %v315 = vlaneseq
        %v316 = vshrl.u32 %v315, 7
        %v317 = vsub.s32 0, %v316
        %v318 = vrot.slane %v313, %v317
        %v319 = vlaneseq
        %v320 = vshrl.u32 %v319, 7
        %v321 = vsub.s32 1, %v320
        %v322 = vrot.slane %v313, %v321
        %v333 = vunpack.c.l.b16 %v305
        %v334 = vunpack.c.h.b16 %v305
        %v335 = vunpack.c.l.b16 %v306
        %v336 = vunpack.c.h.b16 %v306
        %v337 = vunpack.c.l.b16 %v307
        %v338 = vunpack.c.h.b16 %v307
        %v339 = vunpack.c.l.b16 %v308
        %v340 = vunpack.c.h.b16 %v308
        %v341 = vunpack.c.l.b16 %v309
        %v342 = vunpack.c.h.b16 %v309
        %v343 = vunpack.c.l.b16 %v310
        %v344 = vunpack.c.h.b16 %v310
        %v345 = vunpack.c.l.b16 %v311
        %v346 = vunpack.c.h.b16 %v311
        %v347 = vunpack.c.l.b16 %v312
        %v348 = vunpack.c.h.b16 %v312
        %v349 = vpack.c.b16 %v335, %v333
        %v350 = vpack.c.b16 %v336, %v334
        %v351 = vpack.c.b16 %v339, %v337
        %v352 = vpack.c.b16 %v340, %v338
        %v353 = vpack.c.b16 %v343, %v341
        %v354 = vpack.c.b16 %v344, %v342
        %v355 = vpack.c.b16 %v347, %v345
        %v356 = vpack.c.b16 %v348, %v346
        %vm365 = vcmask 523264
        %v367 = vsel %vm365, %v297, 0
        %v370 = vsel %vm365, %v298, 0
        %v373 = vsel %vm365, %v299, 0
        %v376 = vsel %vm365, %v300, 0
        %v379 = vsel %vm365, %v301, 0
        %v382 = vsel %vm365, %v302, 0
        %v385 = vsel %vm365, %v303, 0
        %v388 = vsel %vm365, %v304, 0
        %390 = vmatprep.subr.bf16.mxu0 %v350
        %391 = vmatpush1.bf16.msra.mxu0 %v349
        %392 = vmatprep.subr.bf16.mxu0 %v352
        %393 = vmatpush1.bf16.msra.mxu0 %v351
        %394 = vmatprep.subr.bf16.mxu0 %v354
        %395 = vmatpush1.bf16.msra.mxu0 %v353
        %396 = vmatprep.subr.bf16.mxu0 %v356
        %397 = vmatpush1.bf16.msra.mxu0 %v355
        %398 = vmatprep.subr.bf16.mxu0 0
        %399 = vmatpush1.bf16.msra.mxu0 0
        %400 = vmatprep.subr.bf16.mxu0 0
        %401 = vmatpush1.bf16.msra.mxu0 0
        %402 = vmatprep.subr.bf16.mxu0 0
        %403 = vmatpush1.bf16.msra.mxu0 0
        %404 = vmatprep.subr.bf16.mxu0 0
        %405 = vmatpush1.bf16.msra.mxu0 0
        %406 = vmatprep.subr.bf16.mxu0 0
        %407 = vmatpush1.bf16.msra.mxu0 0
        %408 = vmatprep.subr.bf16.mxu0 0
        %409 = vmatpush1.bf16.msra.mxu0 0
        %410 = vmatprep.subr.bf16.mxu0 0
        %411 = vmatpush1.bf16.msra.mxu0 0
        %412 = vmatprep.subr.bf16.mxu0 0
        %413 = vmatpush1.bf16.msra.mxu0 0
        %414 = vmatprep.subr.bf16.mxu0 0
        %415 = vmatpush1.bf16.msra.mxu0 0
        %416 = vmatprep.subr.bf16.mxu0 0
        %417 = vmatpush1.bf16.msra.mxu0 0
        %418 = vmatprep.subr.bf16.mxu0 0
        %419 = vmatpush1.bf16.msra.mxu0 0
        %420 = vmatprep.subr.bf16.mxu0 0
        %421 = vmatpush1.bf16.msra.mxu0 0
        %422 = vmatprep.mubr.bf16.mxu0 0
        %423 = vmatmul.mubr.bf16.gmra.mrb[0].mxu0 %v367
        %v424 = vpop.f32.mrb[0].mxu0
        %v425 = vadd.f32 %v318, %v424
        %v426 = vpop.f32.mrb[0].mxu0
        %v427 = vadd.f32 %v322, %v426
        %v428 = vpop.f32.mrb[0].mxu0
        %v429 = vadd.f32 %v318, %v428
        %v430 = vpop.f32.mrb[0].mxu0
        %v431 = vadd.f32 %v322, %v430
        %432 = vmatprep.mubr.bf16.mxu0 0
        %433 = vmatmul.mubr.bf16.gmra.mrb[0].mxu0 %v370
        %v434 = vpop.f32.mrb[0].mxu0
        %v435 = vadd.f32 %v318, %v434
        %v436 = vpop.f32.mrb[0].mxu0
        %v437 = vadd.f32 %v322, %v436
        %v438 = vpop.f32.mrb[0].mxu0
        %v439 = vadd.f32 %v318, %v438
        %v440 = vpop.f32.mrb[0].mxu0
        %v441 = vadd.f32 %v322, %v440
        %442 = vmatprep.mubr.bf16.mxu0 0
        %443 = vmatmul.mubr.bf16.gmra.mrb[0].mxu0 %v373
        %v444 = vpop.f32.mrb[0].mxu0
        %v445 = vadd.f32 %v318, %v444
        %v446 = vpop.f32.mrb[0].mxu0
        %v447 = vadd.f32 %v322, %v446
        %v448 = vpop.f32.mrb[0].mxu0
        %v449 = vadd.f32 %v318, %v448
        %v450 = vpop.f32.mrb[0].mxu0
        %v451 = vadd.f32 %v322, %v450
        %452 = vmatprep.mubr.bf16.mxu0 0
        %453 = vmatmul.mubr.bf16.gmra.mrb[0].mxu0 %v376
        %v454 = vpop.f32.mrb[0].mxu0
        %v455 = vadd.f32 %v318, %v454
        %v456 = vpop.f32.mrb[0].mxu0
        %v457 = vadd.f32 %v322, %v456
        %v458 = vpop.f32.mrb[0].mxu0
        %v459 = vadd.f32 %v318, %v458
        %v460 = vpop.f32.mrb[0].mxu0
        %v461 = vadd.f32 %v322, %v460
        %462 = vmatprep.mubr.bf16.mxu0 0
        %463 = vmatmul.mubr.bf16.gmra.mrb[0].mxu0 %v379
        %v464 = vpop.f32.mrb[0].mxu0
        %v465 = vadd.f32 %v318, %v464
        %v466 = vpop.f32.mrb[0].mxu0
        %v467 = vadd.f32 %v322, %v466
        %v468 = vpop.f32.mrb[0].mxu0
        %v469 = vadd.f32 %v318, %v468
        %v470 = vpop.f32.mrb[0].mxu0
        %v471 = vadd.f32 %v322, %v470
        %472 = vmatprep.mubr.bf16.mxu0 0
        %473 = vmatmul.mubr.bf16.gmra.mrb[0].mxu0 %v382
        %v474 = vpop.f32.mrb[0].mxu0
        %v475 = vadd.f32 %v318, %v474
        %v476 = vpop.f32.mrb[0].mxu0
        %v477 = vadd.f32 %v322, %v476
        %v478 = vpop.f32.mrb[0].mxu0
        %v479 = vadd.f32 %v318, %v478
        %v480 = vpop.f32.mrb[0].mxu0
        %v481 = vadd.f32 %v322, %v480
        %482 = vmatprep.mubr.bf16.mxu0 0
        %483 = vmatmul.mubr.bf16.gmra.mrb[0].mxu0 %v385
        %v484 = vpop.f32.mrb[0].mxu0
        %v485 = vadd.f32 %v318, %v484
        %v486 = vpop.f32.mrb[0].mxu0
        %v487 = vadd.f32 %v322, %v486
        %v488 = vpop.f32.mrb[0].mxu0
        %v489 = vadd.f32 %v318, %v488
        %v490 = vpop.f32.mrb[0].mxu0
        %v491 = vadd.f32 %v322, %v490
        %492 = vmatprep.mubr.bf16.mxu0 0
        %493 = vmatmul.mubr.bf16.gmra.mrb[0].mxu0 %v388
        %v494 = vpop.f32.mrb[0].mxu0
        %v495 = vadd.f32 %v318, %v494
        %v496 = vpop.f32.mrb[0].mxu0
        %v497 = vadd.f32 %v322, %v496
        %v498 = vpop.f32.mrb[0].mxu0
        %v499 = vadd.f32 %v318, %v498
        %v500 = vpop.f32.mrb[0].mxu0
        %v501 = vadd.f32 %v322, %v500
        %502 = vdwg.mxu0
        %v503 = vxor.u32 %v425, 2147483648
        %v504 = vxor.u32 %v427, 2147483648
        %v505 = vxor.u32 %v429, 2147483648
        %v506 = vxor.u32 %v431, 2147483648
        %v507 = vxor.u32 %v435, 2147483648
        %v508 = vxor.u32 %v437, 2147483648
        %v509 = vxor.u32 %v439, 2147483648
        %v510 = vxor.u32 %v441, 2147483648
        %v511 = vxor.u32 %v445, 2147483648
        %v512 = vxor.u32 %v447, 2147483648
        %v513 = vxor.u32 %v449, 2147483648
        %v514 = vxor.u32 %v451, 2147483648
        %v515 = vxor.u32 %v455, 2147483648
        %v516 = vxor.u32 %v457, 2147483648
        %v517 = vxor.u32 %v459, 2147483648
        %v518 = vxor.u32 %v461, 2147483648
        %v519 = vxor.u32 %v465, 2147483648
        %v520 = vxor.u32 %v467, 2147483648
        %v521 = vxor.u32 %v469, 2147483648
        %v522 = vxor.u32 %v471, 2147483648
        %v523 = vxor.u32 %v475, 2147483648
        %v524 = vxor.u32 %v477, 2147483648
        %v525 = vxor.u32 %v479, 2147483648
        %v526 = vxor.u32 %v481, 2147483648
        %v527 = vxor.u32 %v485, 2147483648
        %v528 = vxor.u32 %v487, 2147483648
        %v529 = vxor.u32 %v489, 2147483648
        %v530 = vxor.u32 %v491, 2147483648
        %v531 = vxor.u32 %v495, 2147483648
        %v532 = vxor.u32 %v497, 2147483648
        %v533 = vxor.u32 %v499, 2147483648
        %v534 = vxor.u32 %v501, 2147483648
        %v535 = vmul.f32 %v503, 1.442695
        %v536 = vpow.pop %v535
        %v537 = vmul.f32 %v504, 1.442695
        %v538 = vpow.pop %v537
        %v539 = vmul.f32 %v505, 1.442695
        %v540 = vpow.pop %v539
        %v541 = vmul.f32 %v506, 1.442695
        %v542 = vpow.pop %v541
        %v543 = vmul.f32 %v507, 1.442695
        %v544 = vpow.pop %v543
        %v545 = vmul.f32 %v508, 1.442695
        %v546 = vpow.pop %v545
        %v547 = vmul.f32 %v509, 1.442695
        %v548 = vpow.pop %v547
        %v549 = vmul.f32 %v510, 1.442695
        %v550 = vpow.pop %v549
        %v551 = vmul.f32 %v511, 1.442695
        %v552 = vpow.pop %v551
        %v553 = vmul.f32 %v512, 1.442695
        %v554 = vpow.pop %v553
        %v555 = vmul.f32 %v513, 1.442695
        %v556 = vpow.pop %v555
        %v557 = vmul.f32 %v514, 1.442695
        %v558 = vpow.pop %v557
        %v559 = vmul.f32 %v515, 1.442695
        %v560 = vpow.pop %v559
        %v561 = vmul.f32 %v516, 1.442695
        %v562 = vpow.pop %v561
        %v563 = vmul.f32 %v517, 1.442695
        %v564 = vpow.pop %v563
        %v565 = vmul.f32 %v518, 1.442695
        %v566 = vpow.pop %v565
        %v567 = vmul.f32 %v519, 1.442695
        %v568 = vpow.pop %v567
        %v569 = vmul.f32 %v520, 1.442695
        %v570 = vpow.pop %v569
        %v571 = vmul.f32 %v521, 1.442695
        %v572 = vpow.pop %v571
        %v573 = vmul.f32 %v522, 1.442695
        %v574 = vpow.pop %v573
        %v575 = vmul.f32 %v523, 1.442695
        %v576 = vpow.pop %v575
        %v577 = vmul.f32 %v524, 1.442695
        %v578 = vpow.pop %v577
        %v579 = vmul.f32 %v525, 1.442695
        %v580 = vpow.pop %v579
        %v581 = vmul.f32 %v526, 1.442695
        %v582 = vpow.pop %v581
        %v583 = vmul.f32 %v527, 1.442695
        %v584 = vpow.pop %v583
        %v585 = vmul.f32 %v528, 1.442695
        %v586 = vpow.pop %v585
        %v587 = vmul.f32 %v529, 1.442695
        %v588 = vpow.pop %v587
        %v589 = vmul.f32 %v530, 1.442695
        %v590 = vpow.pop %v589
        %v591 = vmul.f32 %v531, 1.442695
        %v592 = vpow.pop %v591
        %v593 = vmul.f32 %v532, 1.442695
        %v594 = vpow.pop %v593
        %v595 = vmul.f32 %v533, 1.442695
        %v596 = vpow.pop %v595
        %v597 = vmul.f32 %v534, 1.442695
        %v598 = vpow.pop %v597
        %v599 = vadd.f32 %v536, 1.0
        %v600 = vadd.f32 %v538, 1.0
        %v601 = vadd.f32 %v540, 1.0
        %v602 = vadd.f32 %v542, 1.0
        %v603 = vadd.f32 %v544, 1.0
        %v604 = vadd.f32 %v546, 1.0
        %v605 = vadd.f32 %v548, 1.0
        %v606 = vadd.f32 %v550, 1.0
        %v607 = vadd.f32 %v552, 1.0
        %v608 = vadd.f32 %v554, 1.0
        %v609 = vadd.f32 %v556, 1.0
        %v610 = vadd.f32 %v558, 1.0
        %v611 = vadd.f32 %v560, 1.0
        %v612 = vadd.f32 %v562, 1.0
        %v613 = vadd.f32 %v564, 1.0
        %v614 = vadd.f32 %v566, 1.0
        %v615 = vadd.f32 %v568, 1.0
        %v616 = vadd.f32 %v570, 1.0
        %v617 = vadd.f32 %v572, 1.0
        %v618 = vadd.f32 %v574, 1.0
        %v619 = vadd.f32 %v576, 1.0
        %v620 = vadd.f32 %v578, 1.0
        %v621 = vadd.f32 %v580, 1.0
        %v622 = vadd.f32 %v582, 1.0
        %v623 = vadd.f32 %v584, 1.0
        %v624 = vadd.f32 %v586, 1.0
        %v625 = vadd.f32 %v588, 1.0
        %v626 = vadd.f32 %v590, 1.0
        %v627 = vadd.f32 %v592, 1.0
        %v628 = vadd.f32 %v594, 1.0
        %v629 = vadd.f32 %v596, 1.0
        %v630 = vadd.f32 %v598, 1.0
        %v631 = vrcp.pop %v599
        %v632 = vmul.f32 1.0, %v631
        %v633 = vrcp.pop %v600
        %v634 = vmul.f32 1.0, %v633
        %v635 = vrcp.pop %v601
        %v636 = vmul.f32 1.0, %v635
        %v637 = vrcp.pop %v602
        %v638 = vmul.f32 1.0, %v637
        %v639 = vrcp.pop %v603
        %v640 = vmul.f32 1.0, %v639
        %v641 = vrcp.pop %v604
        %v642 = vmul.f32 1.0, %v641
        %v643 = vrcp.pop %v605
        %v644 = vmul.f32 1.0, %v643
        %v645 = vrcp.pop %v606
        %v646 = vmul.f32 1.0, %v645
        %v647 = vrcp.pop %v607
        %v648 = vmul.f32 1.0, %v647
        %v649 = vrcp.pop %v608
        %v650 = vmul.f32 1.0, %v649
        %v651 = vrcp.pop %v609
        %v652 = vmul.f32 1.0, %v651
        %v653 = vrcp.pop %v610
        %v654 = vmul.f32 1.0, %v653
        %v655 = vrcp.pop %v611
        %v656 = vmul.f32 1.0, %v655
        %v657 = vrcp.pop %v612
        %v658 = vmul.f32 1.0, %v657
        %v659 = vrcp.pop %v613
        %v660 = vmul.f32 1.0, %v659
        %v661 = vrcp.pop %v614
        %v662 = vmul.f32 1.0, %v661
        %v663 = vrcp.pop %v615
        %v664 = vmul.f32 1.0, %v663
        %v665 = vrcp.pop %v616
        %v666 = vmul.f32 1.0, %v665
        %v667 = vrcp.pop %v617
        %v668 = vmul.f32 1.0, %v667
        %v669 = vrcp.pop %v618
        %v670 = vmul.f32 1.0, %v669
        %v671 = vrcp.pop %v619
        %v672 = vmul.f32 1.0, %v671
        %v673 = vrcp.pop %v620
        %v674 = vmul.f32 1.0, %v673
        %v675 = vrcp.pop %v621
        %v676 = vmul.f32 1.0, %v675
        %v677 = vrcp.pop %v622
        %v678 = vmul.f32 1.0, %v677
        %v679 = vrcp.pop %v623
        %v680 = vmul.f32 1.0, %v679
        %v681 = vrcp.pop %v624
        %v682 = vmul.f32 1.0, %v681
        %v683 = vrcp.pop %v625
        %v684 = vmul.f32 1.0, %v683
        %v685 = vrcp.pop %v626
        %v686 = vmul.f32 1.0, %v685
        %v687 = vrcp.pop %v627
        %v688 = vmul.f32 1.0, %v687
        %v689 = vrcp.pop %v628
        %v690 = vmul.f32 1.0, %v689
        %v691 = vrcp.pop %v629
        %v692 = vmul.f32 1.0, %v691
        %v693 = vrcp.pop %v630
        %v694 = vmul.f32 1.0, %v693
        %v695 = vmul.f32 %v425, %v632
        %v696 = vmul.f32 %v427, %v634
        %v697 = vmul.f32 %v429, %v636
        %v698 = vmul.f32 %v431, %v638
        %v699 = vmul.f32 %v435, %v640
        %v700 = vmul.f32 %v437, %v642
        %v701 = vmul.f32 %v439, %v644
        %v702 = vmul.f32 %v441, %v646
        %v703 = vmul.f32 %v445, %v648
        %v704 = vmul.f32 %v447, %v650
        %v705 = vmul.f32 %v449, %v652
        %v706 = vmul.f32 %v451, %v654
        %v707 = vmul.f32 %v455, %v656
        %v708 = vmul.f32 %v457, %v658
        %v709 = vmul.f32 %v459, %v660
        %v710 = vmul.f32 %v461, %v662
        %v711 = vmul.f32 %v465, %v664
        %v712 = vmul.f32 %v467, %v666
        %v713 = vmul.f32 %v469, %v668
        %v714 = vmul.f32 %v471, %v670
        %v715 = vmul.f32 %v475, %v672
        %v716 = vmul.f32 %v477, %v674
        %v717 = vmul.f32 %v479, %v676
        %v718 = vmul.f32 %v481, %v678
        %v719 = vmul.f32 %v485, %v680
        %v720 = vmul.f32 %v487, %v682
        %v721 = vmul.f32 %v489, %v684
        %v722 = vmul.f32 %v491, %v686
        %v723 = vmul.f32 %v495, %v688
        %v724 = vmul.f32 %v497, %v690
        %v725 = vmul.f32 %v499, %v692
        %v726 = vmul.f32 %v501, %v694
        %v727 = vpack.c.bf16 %v697, %v695
        %v728 = vpack.c.bf16 %v698, %v696
        %v729 = vpack.c.bf16 %v701, %v699
        %v730 = vpack.c.bf16 %v702, %v700
        %v731 = vpack.c.bf16 %v705, %v703
        %v732 = vpack.c.bf16 %v706, %v704
        %v733 = vpack.c.bf16 %v709, %v707
        %v734 = vpack.c.bf16 %v710, %v708
        %v735 = vpack.c.bf16 %v713, %v711
        %v736 = vpack.c.bf16 %v714, %v712
        %v737 = vpack.c.bf16 %v717, %v715
        %v738 = vpack.c.bf16 %v718, %v716
        %v739 = vpack.c.bf16 %v721, %v719
        %v740 = vpack.c.bf16 %v722, %v720
        %v741 = vpack.c.bf16 %v725, %v723
        %v742 = vpack.c.bf16 %v726, %v724
        %v743 = vld [vmem:[%s3] sm:$0xff]
        %v744 = vld [vmem:[%s3 + $0x8] sm:$0xff]
        %v745 = vld [vmem:[%s3 + $0x10] sm:$0xff]
        %v746 = vld [vmem:[%s3 + $0x18] sm:$0xff]
        %v747 = vld [vmem:[%s3 + $0x20] sm:$0xff]
        %v748 = vld [vmem:[%s3 + $0x28] sm:$0xff]
        %v749 = vld [vmem:[%s3 + $0x30] sm:$0xff]
        %v750 = vld [vmem:[%s3 + $0x38] sm:$0xff]
        %v751 = vld [vmem:[%s3 + $0x40] sm:$0xff]
        %v752 = vld [vmem:[%s3 + $0x48] sm:$0xff]
        %v753 = vld [vmem:[%s3 + $0x50] sm:$0xff]
        %v754 = vld [vmem:[%s3 + $0x58] sm:$0xff]
        %v755 = vld [vmem:[%s3 + $0x60] sm:$0xff]
        %v756 = vld [vmem:[%s3 + $0x68] sm:$0xff]
        %v757 = vld [vmem:[%s3 + $0x70] sm:$0xff]
        %v758 = vld [vmem:[%s3 + $0x78] sm:$0xff]
        %v759 = vld [vmem:[%s3 + $0x80] sm:$0xff]
        %v760 = vld [vmem:[%s3 + $0x88] sm:$0xff]
        %v761 = vld [vmem:[%s3 + $0x90] sm:$0xff]
        %v762 = vld [vmem:[%s3 + $0x98] sm:$0xff]
        %v763 = vld [vmem:[%s3 + $0xa0] sm:$0xff]
        %v764 = vld [vmem:[%s3 + $0xa8] sm:$0xff]
        %v765 = vld [vmem:[%s3 + $0xb0] sm:$0xff]
        %v766 = vld [vmem:[%s3 + $0xb8] sm:$0xff]
        %v767 = vld [vmem:[%s3 + $0xc0] sm:$0xff]
        %v768 = vld [vmem:[%s3 + $0xc8] sm:$0xff]
        %v769 = vld [vmem:[%s3 + $0xd0] sm:$0xff]
        %v770 = vld [vmem:[%s3 + $0xd8] sm:$0xff]
        %v771 = vld [vmem:[%s3 + $0xe0] sm:$0xff]
        %v772 = vld [vmem:[%s3 + $0xe8] sm:$0xff]
        %v773 = vld [vmem:[%s3 + $0xf0] sm:$0xff]
        %v774 = vld [vmem:[%s3 + $0xf8] sm:$0xff]
        %v775 = vld [vmem:[%s4] sm:$0x3]
        %v777 = vlaneseq
        %v778 = vshrl.u32 %v777, 7
        %v779 = vsub.s32 0, %v778
        %v780 = vrot.slane %v775, %v779
        %v781 = vlaneseq
        %v782 = vshrl.u32 %v781, 7
        %v783 = vsub.s32 1, %v782
        %v784 = vrot.slane %v775, %v783
        %v819 = vunpack.c.l.b16 %v743
        %v820 = vunpack.c.h.b16 %v743
        %v821 = vunpack.c.l.b16 %v744
        %v822 = vunpack.c.h.b16 %v744
        %v823 = vunpack.c.l.b16 %v745
        %v824 = vunpack.c.h.b16 %v745
        %v825 = vunpack.c.l.b16 %v746
        %v826 = vunpack.c.h.b16 %v746
        %v827 = vunpack.c.l.b16 %v747
        %v828 = vunpack.c.h.b16 %v747
        %v829 = vunpack.c.l.b16 %v748
        %v830 = vunpack.c.h.b16 %v748
        %v831 = vunpack.c.l.b16 %v749
        %v832 = vunpack.c.h.b16 %v749
        %v833 = vunpack.c.l.b16 %v750
        %v834 = vunpack.c.h.b16 %v750
        %v835 = vunpack.c.l.b16 %v751
        %v836 = vunpack.c.h.b16 %v751
        %v837 = vunpack.c.l.b16 %v752
        %v838 = vunpack.c.h.b16 %v752
        %v839 = vunpack.c.l.b16 %v753
        %v840 = vunpack.c.h.b16 %v753
        %v841 = vunpack.c.l.b16 %v754
        %v842 = vunpack.c.h.b16 %v754
        %v843 = vunpack.c.l.b16 %v755
        %v844 = vunpack.c.h.b16 %v755
        %v845 = vunpack.c.l.b16 %v756
        %v846 = vunpack.c.h.b16 %v756
        %v847 = vunpack.c.l.b16 %v757
        %v848 = vunpack.c.h.b16 %v757
        %v849 = vunpack.c.l.b16 %v758
        %v850 = vunpack.c.h.b16 %v758
        %v851 = vunpack.c.l.b16 %v759
        %v852 = vunpack.c.h.b16 %v759
        %v853 = vunpack.c.l.b16 %v760
        %v854 = vunpack.c.h.b16 %v760
        %v855 = vunpack.c.l.b16 %v761
        %v856 = vunpack.c.h.b16 %v761
        %v857 = vunpack.c.l.b16 %v762
        %v858 = vunpack.c.h.b16 %v762
        %v859 = vunpack.c.l.b16 %v763
        %v860 = vunpack.c.h.b16 %v763
        %v861 = vunpack.c.l.b16 %v764
        %v862 = vunpack.c.h.b16 %v764
        %v863 = vunpack.c.l.b16 %v765
        %v864 = vunpack.c.h.b16 %v765
        %v865 = vunpack.c.l.b16 %v766
        %v866 = vunpack.c.h.b16 %v766
        %v867 = vunpack.c.l.b16 %v767
        %v868 = vunpack.c.h.b16 %v767
        %v869 = vunpack.c.l.b16 %v768
        %v870 = vunpack.c.h.b16 %v768
        %v871 = vunpack.c.l.b16 %v769
        %v872 = vunpack.c.h.b16 %v769
        %v873 = vunpack.c.l.b16 %v770
        %v874 = vunpack.c.h.b16 %v770
        %v875 = vunpack.c.l.b16 %v771
        %v876 = vunpack.c.h.b16 %v771
        %v877 = vunpack.c.l.b16 %v772
        %v878 = vunpack.c.h.b16 %v772
        %v879 = vunpack.c.l.b16 %v773
        %v880 = vunpack.c.h.b16 %v773
        %v881 = vunpack.c.l.b16 %v774
        %v882 = vunpack.c.h.b16 %v774
        %v883 = vpack.c.b16 %v821, %v819
        %v884 = vpack.c.b16 %v822, %v820
        %v885 = vpack.c.b16 %v825, %v823
        %v886 = vpack.c.b16 %v826, %v824
        %v887 = vpack.c.b16 %v829, %v827
        %v888 = vpack.c.b16 %v830, %v828
        %v889 = vpack.c.b16 %v833, %v831
        %v890 = vpack.c.b16 %v834, %v832
        %v891 = vpack.c.b16 %v837, %v835
        %v892 = vpack.c.b16 %v838, %v836
        %v893 = vpack.c.b16 %v841, %v839
        %v894 = vpack.c.b16 %v842, %v840
        %v895 = vpack.c.b16 %v845, %v843
        %v896 = vpack.c.b16 %v846, %v844
        %v897 = vpack.c.b16 %v849, %v847
        %v898 = vpack.c.b16 %v850, %v848
        %v899 = vpack.c.b16 %v853, %v851
        %v900 = vpack.c.b16 %v854, %v852
        %v901 = vpack.c.b16 %v857, %v855
        %v902 = vpack.c.b16 %v858, %v856
        %v903 = vpack.c.b16 %v861, %v859
        %v904 = vpack.c.b16 %v862, %v860
        %v905 = vpack.c.b16 %v865, %v863
        %v906 = vpack.c.b16 %v866, %v864
        %v907 = vpack.c.b16 %v869, %v867
        %v908 = vpack.c.b16 %v870, %v868
        %v909 = vpack.c.b16 %v873, %v871
        %v910 = vpack.c.b16 %v874, %v872
        %v911 = vpack.c.b16 %v877, %v875
        %v912 = vpack.c.b16 %v878, %v876
        %v913 = vpack.c.b16 %v881, %v879
        %v914 = vpack.c.b16 %v882, %v880
        %947 = vmatprep.subr.bf16.mxu0 %v884
        %948 = vmatpush1.bf16.msra.mxu0 %v883
        %949 = vmatprep.subr.bf16.mxu0 %v886
        %950 = vmatpush1.bf16.msra.mxu0 %v885
        %951 = vmatprep.subr.bf16.mxu0 %v888
        %952 = vmatpush1.bf16.msra.mxu0 %v887
        %953 = vmatprep.subr.bf16.mxu0 %v890
        %954 = vmatpush1.bf16.msra.mxu0 %v889
        %955 = vmatprep.subr.bf16.mxu0 %v892
        %956 = vmatpush1.bf16.msra.mxu0 %v891
        %957 = vmatprep.subr.bf16.mxu0 %v894
        %958 = vmatpush1.bf16.msra.mxu0 %v893
        %959 = vmatprep.subr.bf16.mxu0 %v896
        %960 = vmatpush1.bf16.msra.mxu0 %v895
        %961 = vmatprep.subr.bf16.mxu0 %v898
        %962 = vmatpush1.bf16.msra.mxu0 %v897
        %963 = vmatprep.subr.bf16.mxu0 %v900
        %964 = vmatpush1.bf16.msra.mxu0 %v899
        %965 = vmatprep.subr.bf16.mxu0 %v902
        %966 = vmatpush1.bf16.msra.mxu0 %v901
        %967 = vmatprep.subr.bf16.mxu0 %v904
        %968 = vmatpush1.bf16.msra.mxu0 %v903
        %969 = vmatprep.subr.bf16.mxu0 %v906
        %970 = vmatpush1.bf16.msra.mxu0 %v905
        %971 = vmatprep.subr.bf16.mxu0 %v908
        %972 = vmatpush1.bf16.msra.mxu0 %v907
        %973 = vmatprep.subr.bf16.mxu0 %v910
        %974 = vmatpush1.bf16.msra.mxu0 %v909
        %975 = vmatprep.subr.bf16.mxu0 %v912
        %976 = vmatpush1.bf16.msra.mxu0 %v911
        %977 = vmatprep.subr.bf16.mxu0 %v914
        %978 = vmatpush1.bf16.msra.mxu0 %v913
        %979 = vmatprep.mubr.bf16.mxu0 %v728
        %980 = vmatmul.mubr.bf16.gmra.mrb[0].mxu0 %v727
        %v981 = vpop.f32.mrb[0].mxu0
        %v982 = vadd.f32 %v780, %v981
        %v983 = vpop.f32.mrb[0].mxu0
        %v984 = vadd.f32 %v784, %v983
        %v985 = vpop.f32.mrb[0].mxu0
        %v986 = vadd.f32 %v780, %v985
        %v987 = vpop.f32.mrb[0].mxu0
        %v988 = vadd.f32 %v784, %v987
        %989 = vmatprep.mubr.bf16.mxu0 %v730
        %990 = vmatmul.mubr.bf16.gmra.mrb[0].mxu0 %v729
        %v991 = vpop.f32.mrb[0].mxu0
        %v992 = vadd.f32 %v780, %v991
        %v993 = vpop.f32.mrb[0].mxu0
        %v994 = vadd.f32 %v784, %v993
        %v995 = vpop.f32.mrb[0].mxu0
        %v996 = vadd.f32 %v780, %v995
        %v997 = vpop.f32.mrb[0].mxu0
        %v998 = vadd.f32 %v784, %v997
        %999 = vmatprep.mubr.bf16.mxu0 %v732
        %1000 = vmatmul.mubr.bf16.gmra.mrb[0].mxu0 %v731
        %v1001 = vpop.f32.mrb[0].mxu0
        %v1002 = vadd.f32 %v780, %v1001
        %v1003 = vpop.f32.mrb[0].mxu0
        %v1004 = vadd.f32 %v784, %v1003
        %v1005 = vpop.f32.mrb[0].mxu0
        %v1006 = vadd.f32 %v780, %v1005
        %v1007 = vpop.f32.mrb[0].mxu0
        %v1008 = vadd.f32 %v784, %v1007
        %1009 = vmatprep.mubr.bf16.mxu0 %v734
        %1010 = vmatmul.mubr.bf16.gmra.mrb[0].mxu0 %v733
        %v1011 = vpop.f32.mrb[0].mxu0
        %v1012 = vadd.f32 %v780, %v1011
        %v1013 = vpop.f32.mrb[0].mxu0
        %v1014 = vadd.f32 %v784, %v1013
        %v1015 = vpop.f32.mrb[0].mxu0
        %v1016 = vadd.f32 %v780, %v1015
        %v1017 = vpop.f32.mrb[0].mxu0
        %v1018 = vadd.f32 %v784, %v1017
        %1019 = vmatprep.mubr.bf16.mxu0 %v736
        %1020 = vmatmul.mubr.bf16.gmra.mrb[0].mxu0 %v735
        %v1021 = vpop.f32.mrb[0].mxu0
        %v1022 = vadd.f32 %v780, %v1021
        %v1023 = vpop.f32.mrb[0].mxu0
        %v1024 = vadd.f32 %v784, %v1023
        %v1025 = vpop.f32.mrb[0].mxu0
        %v1026 = vadd.f32 %v780, %v1025
        %v1027 = vpop.f32.mrb[0].mxu0
        %v1028 = vadd.f32 %v784, %v1027
        %1029 = vmatprep.mubr.bf16.mxu0 %v738
        %1030 = vmatmul.mubr.bf16.gmra.mrb[0].mxu0 %v737
        %v1031 = vpop.f32.mrb[0].mxu0
        %v1032 = vadd.f32 %v780, %v1031
        %v1033 = vpop.f32.mrb[0].mxu0
        %v1034 = vadd.f32 %v784, %v1033
        %v1035 = vpop.f32.mrb[0].mxu0
        %v1036 = vadd.f32 %v780, %v1035
        %v1037 = vpop.f32.mrb[0].mxu0
        %v1038 = vadd.f32 %v784, %v1037
        %1039 = vmatprep.mubr.bf16.mxu0 %v740
        %1040 = vmatmul.mubr.bf16.gmra.mrb[0].mxu0 %v739
        %v1041 = vpop.f32.mrb[0].mxu0
        %v1042 = vadd.f32 %v780, %v1041
        %v1043 = vpop.f32.mrb[0].mxu0
        %v1044 = vadd.f32 %v784, %v1043
        %v1045 = vpop.f32.mrb[0].mxu0
        %v1046 = vadd.f32 %v780, %v1045
        %v1047 = vpop.f32.mrb[0].mxu0
        %v1048 = vadd.f32 %v784, %v1047
        %1049 = vmatprep.mubr.bf16.mxu0 %v742
        %1050 = vmatmul.mubr.bf16.gmra.mrb[0].mxu0 %v741
        %v1051 = vpop.f32.mrb[0].mxu0
        %v1052 = vadd.f32 %v780, %v1051
        %v1053 = vpop.f32.mrb[0].mxu0
        %v1054 = vadd.f32 %v784, %v1053
        %v1055 = vpop.f32.mrb[0].mxu0
        %v1056 = vadd.f32 %v780, %v1055
        %v1057 = vpop.f32.mrb[0].mxu0
        %v1058 = vadd.f32 %v784, %v1057
        %1059 = vdwg.mxu0
        %v1060 = vxor.u32 %v982, 2147483648
        %v1061 = vxor.u32 %v984, 2147483648
        %v1062 = vxor.u32 %v986, 2147483648
        %v1063 = vxor.u32 %v988, 2147483648
        %v1064 = vxor.u32 %v992, 2147483648
        %v1065 = vxor.u32 %v994, 2147483648
        %v1066 = vxor.u32 %v996, 2147483648
        %v1067 = vxor.u32 %v998, 2147483648
        %v1068 = vxor.u32 %v1002, 2147483648
        %v1069 = vxor.u32 %v1004, 2147483648
        %v1070 = vxor.u32 %v1006, 2147483648
        %v1071 = vxor.u32 %v1008, 2147483648
        %v1072 = vxor.u32 %v1012, 2147483648
        %v1073 = vxor.u32 %v1014, 2147483648
        %v1074 = vxor.u32 %v1016, 2147483648
        %v1075 = vxor.u32 %v1018, 2147483648
        %v1076 = vxor.u32 %v1022, 2147483648
        %v1077 = vxor.u32 %v1024, 2147483648
        %v1078 = vxor.u32 %v1026, 2147483648
        %v1079 = vxor.u32 %v1028, 2147483648
        %v1080 = vxor.u32 %v1032, 2147483648
        %v1081 = vxor.u32 %v1034, 2147483648
        %v1082 = vxor.u32 %v1036, 2147483648
        %v1083 = vxor.u32 %v1038, 2147483648
        %v1084 = vxor.u32 %v1042, 2147483648
        %v1085 = vxor.u32 %v1044, 2147483648
        %v1086 = vxor.u32 %v1046, 2147483648
        %v1087 = vxor.u32 %v1048, 2147483648
        %v1088 = vxor.u32 %v1052, 2147483648
        %v1089 = vxor.u32 %v1054, 2147483648
        %v1090 = vxor.u32 %v1056, 2147483648
        %v1091 = vxor.u32 %v1058, 2147483648
        %v1092 = vmul.f32 %v1060, 1.442695
        %v1093 = vpow.pop %v1092
        %v1094 = vmul.f32 %v1061, 1.442695
        %v1095 = vpow.pop %v1094
        %v1096 = vmul.f32 %v1062, 1.442695
        %v1097 = vpow.pop %v1096
        %v1098 = vmul.f32 %v1063, 1.442695
        %v1099 = vpow.pop %v1098
        %v1100 = vmul.f32 %v1064, 1.442695
        %v1101 = vpow.pop %v1100
        %v1102 = vmul.f32 %v1065, 1.442695
        %v1103 = vpow.pop %v1102
        %v1104 = vmul.f32 %v1066, 1.442695
        %v1105 = vpow.pop %v1104
        %v1106 = vmul.f32 %v1067, 1.442695
        %v1107 = vpow.pop %v1106
        %v1108 = vmul.f32 %v1068, 1.442695
        %v1109 = vpow.pop %v1108
        %v1110 = vmul.f32 %v1069, 1.442695
        %v1111 = vpow.pop %v1110
        %v1112 = vmul.f32 %v1070, 1.442695
        %v1113 = vpow.pop %v1112
        %v1114 = vmul.f32 %v1071, 1.442695
        %v1115 = vpow.pop %v1114
        %v1116 = vmul.f32 %v1072, 1.442695
        %v1117 = vpow.pop %v1116
        %v1118 = vmul.f32 %v1073, 1.442695
        %v1119 = vpow.pop %v1118
        %v1120 = vmul.f32 %v1074, 1.442695
        %v1121 = vpow.pop %v1120
        %v1122 = vmul.f32 %v1075, 1.442695
        %v1123 = vpow.pop %v1122
        %v1124 = vmul.f32 %v1076, 1.442695
        %v1125 = vpow.pop %v1124
        %v1126 = vmul.f32 %v1077, 1.442695
        %v1127 = vpow.pop %v1126
        %v1128 = vmul.f32 %v1078, 1.442695
        %v1129 = vpow.pop %v1128
        %v1130 = vmul.f32 %v1079, 1.442695
        %v1131 = vpow.pop %v1130
        %v1132 = vmul.f32 %v1080, 1.442695
        %v1133 = vpow.pop %v1132
        %v1134 = vmul.f32 %v1081, 1.442695
        %v1135 = vpow.pop %v1134
        %v1136 = vmul.f32 %v1082, 1.442695
        %v1137 = vpow.pop %v1136
        %v1138 = vmul.f32 %v1083, 1.442695
        %v1139 = vpow.pop %v1138
        %v1140 = vmul.f32 %v1084, 1.442695
        %v1141 = vpow.pop %v1140
        %v1142 = vmul.f32 %v1085, 1.442695
        %v1143 = vpow.pop %v1142
        %v1144 = vmul.f32 %v1086, 1.442695
        %v1145 = vpow.pop %v1144
        %v1146 = vmul.f32 %v1087, 1.442695
        %v1147 = vpow.pop %v1146
        %v1148 = vmul.f32 %v1088, 1.442695
        %v1149 = vpow.pop %v1148
        %v1150 = vmul.f32 %v1089, 1.442695
        %v1151 = vpow.pop %v1150
        %v1152 = vmul.f32 %v1090, 1.442695
        %v1153 = vpow.pop %v1152
        %v1154 = vmul.f32 %v1091, 1.442695
        %v1155 = vpow.pop %v1154
        %v1156 = vadd.f32 %v1093, 1.0
        %v1157 = vadd.f32 %v1095, 1.0
        %v1158 = vadd.f32 %v1097, 1.0
        %v1159 = vadd.f32 %v1099, 1.0
        %v1160 = vadd.f32 %v1101, 1.0
        %v1161 = vadd.f32 %v1103, 1.0
        %v1162 = vadd.f32 %v1105, 1.0
        %v1163 = vadd.f32 %v1107, 1.0
        %v1164 = vadd.f32 %v1109, 1.0
        %v1165 = vadd.f32 %v1111, 1.0
        %v1166 = vadd.f32 %v1113, 1.0
        %v1167 = vadd.f32 %v1115, 1.0
        %v1168 = vadd.f32 %v1117, 1.0
        %v1169 = vadd.f32 %v1119, 1.0
        %v1170 = vadd.f32 %v1121, 1.0
        %v1171 = vadd.f32 %v1123, 1.0
        %v1172 = vadd.f32 %v1125, 1.0
        %v1173 = vadd.f32 %v1127, 1.0
        %v1174 = vadd.f32 %v1129, 1.0
        %v1175 = vadd.f32 %v1131, 1.0
        %v1176 = vadd.f32 %v1133, 1.0
        %v1177 = vadd.f32 %v1135, 1.0
        %v1178 = vadd.f32 %v1137, 1.0
        %v1179 = vadd.f32 %v1139, 1.0
        %v1180 = vadd.f32 %v1141, 1.0
        %v1181 = vadd.f32 %v1143, 1.0
        %v1182 = vadd.f32 %v1145, 1.0
        %v1183 = vadd.f32 %v1147, 1.0
        %v1184 = vadd.f32 %v1149, 1.0
        %v1185 = vadd.f32 %v1151, 1.0
        %v1186 = vadd.f32 %v1153, 1.0
        %v1187 = vadd.f32 %v1155, 1.0
        %v1188 = vrcp.pop %v1156
        %v1189 = vmul.f32 1.0, %v1188
        %v1190 = vrcp.pop %v1157
        %v1191 = vmul.f32 1.0, %v1190
        %v1192 = vrcp.pop %v1158
        %v1193 = vmul.f32 1.0, %v1192
        %v1194 = vrcp.pop %v1159
        %v1195 = vmul.f32 1.0, %v1194
        %v1196 = vrcp.pop %v1160
        %v1197 = vmul.f32 1.0, %v1196
        %v1198 = vrcp.pop %v1161
        %v1199 = vmul.f32 1.0, %v1198
        %v1200 = vrcp.pop %v1162
        %v1201 = vmul.f32 1.0, %v1200
        %v1202 = vrcp.pop %v1163
        %v1203 = vmul.f32 1.0, %v1202
        %v1204 = vrcp.pop %v1164
        %v1205 = vmul.f32 1.0, %v1204
        %v1206 = vrcp.pop %v1165
        %v1207 = vmul.f32 1.0, %v1206
        %v1208 = vrcp.pop %v1166
        %v1209 = vmul.f32 1.0, %v1208
        %v1210 = vrcp.pop %v1167
        %v1211 = vmul.f32 1.0, %v1210
        %v1212 = vrcp.pop %v1168
        %v1213 = vmul.f32 1.0, %v1212
        %v1214 = vrcp.pop %v1169
        %v1215 = vmul.f32 1.0, %v1214
        %v1216 = vrcp.pop %v1170
        %v1217 = vmul.f32 1.0, %v1216
        %v1218 = vrcp.pop %v1171
        %v1219 = vmul.f32 1.0, %v1218
        %v1220 = vrcp.pop %v1172
        %v1221 = vmul.f32 1.0, %v1220
        %v1222 = vrcp.pop %v1173
        %v1223 = vmul.f32 1.0, %v1222
        %v1224 = vrcp.pop %v1174
        %v1225 = vmul.f32 1.0, %v1224
        %v1226 = vrcp.pop %v1175
        %v1227 = vmul.f32 1.0, %v1226
        %v1228 = vrcp.pop %v1176
        %v1229 = vmul.f32 1.0, %v1228
        %v1230 = vrcp.pop %v1177
        %v1231 = vmul.f32 1.0, %v1230
        %v1232 = vrcp.pop %v1178
        %v1233 = vmul.f32 1.0, %v1232
        %v1234 = vrcp.pop %v1179
        %v1235 = vmul.f32 1.0, %v1234
        %v1236 = vrcp.pop %v1180
        %v1237 = vmul.f32 1.0, %v1236
        %v1238 = vrcp.pop %v1181
        %v1239 = vmul.f32 1.0, %v1238
        %v1240 = vrcp.pop %v1182
        %v1241 = vmul.f32 1.0, %v1240
        %v1242 = vrcp.pop %v1183
        %v1243 = vmul.f32 1.0, %v1242
        %v1244 = vrcp.pop %v1184
        %v1245 = vmul.f32 1.0, %v1244
        %v1246 = vrcp.pop %v1185
        %v1247 = vmul.f32 1.0, %v1246
        %v1248 = vrcp.pop %v1186
        %v1249 = vmul.f32 1.0, %v1248
        %v1250 = vrcp.pop %v1187
        %v1251 = vmul.f32 1.0, %v1250
        %v1252 = vmul.f32 %v982, %v1189
        %v1253 = vmul.f32 %v984, %v1191
        %v1254 = vmul.f32 %v986, %v1193
        %v1255 = vmul.f32 %v988, %v1195
        %v1256 = vmul.f32 %v992, %v1197
        %v1257 = vmul.f32 %v994, %v1199
        %v1258 = vmul.f32 %v996, %v1201
        %v1259 = vmul.f32 %v998, %v1203
        %v1260 = vmul.f32 %v1002, %v1205
        %v1261 = vmul.f32 %v1004, %v1207
        %v1262 = vmul.f32 %v1006, %v1209
        %v1263 = vmul.f32 %v1008, %v1211
        %v1264 = vmul.f32 %v1012, %v1213
        %v1265 = vmul.f32 %v1014, %v1215
        %v1266 = vmul.f32 %v1016, %v1217
        %v1267 = vmul.f32 %v1018, %v1219
        %v1268 = vmul.f32 %v1022, %v1221
        %v1269 = vmul.f32 %v1024, %v1223
        %v1270 = vmul.f32 %v1026, %v1225
        %v1271 = vmul.f32 %v1028, %v1227
        %v1272 = vmul.f32 %v1032, %v1229
        %v1273 = vmul.f32 %v1034, %v1231
        %v1274 = vmul.f32 %v1036, %v1233
        %v1275 = vmul.f32 %v1038, %v1235
        %v1276 = vmul.f32 %v1042, %v1237
        %v1277 = vmul.f32 %v1044, %v1239
        %v1278 = vmul.f32 %v1046, %v1241
        %v1279 = vmul.f32 %v1048, %v1243
        %v1280 = vmul.f32 %v1052, %v1245
        %v1281 = vmul.f32 %v1054, %v1247
        %v1282 = vmul.f32 %v1056, %v1249
        %v1283 = vmul.f32 %v1058, %v1251
        %v1284 = vpack.c.bf16 %v1254, %v1252
        %v1285 = vpack.c.bf16 %v1255, %v1253
        %v1286 = vpack.c.bf16 %v1258, %v1256
        %v1287 = vpack.c.bf16 %v1259, %v1257
        %v1288 = vpack.c.bf16 %v1262, %v1260
        %v1289 = vpack.c.bf16 %v1263, %v1261
        %v1290 = vpack.c.bf16 %v1266, %v1264
        %v1291 = vpack.c.bf16 %v1267, %v1265
        %v1292 = vpack.c.bf16 %v1270, %v1268
        %v1293 = vpack.c.bf16 %v1271, %v1269
        %v1294 = vpack.c.bf16 %v1274, %v1272
        %v1295 = vpack.c.bf16 %v1275, %v1273
        %v1296 = vpack.c.bf16 %v1278, %v1276
        %v1297 = vpack.c.bf16 %v1279, %v1277
        %v1298 = vpack.c.bf16 %v1282, %v1280
        %v1299 = vpack.c.bf16 %v1283, %v1281
        %v1300 = vld [vmem:[%s5] sm:$0xf]
        %v1301 = vld [vmem:[%s5 + $0x4] sm:$0xf]
        %v1302 = vld [vmem:[%s5 + $0x8] sm:$0xf]
        %v1303 = vld [vmem:[%s5 + $0xc] sm:$0xf]
        %v1304 = vld [vmem:[%s5 + $0x10] sm:$0xf]
        %v1305 = vld [vmem:[%s5 + $0x14] sm:$0xf]
        %v1306 = vld [vmem:[%s5 + $0x18] sm:$0xf]
        %v1307 = vld [vmem:[%s5 + $0x1c] sm:$0xf]
        %v1308 = vld [vmem:[%s5 + $0x20] sm:$0xf]
        %v1309 = vld [vmem:[%s5 + $0x24] sm:$0xf]
        %v1310 = vld [vmem:[%s5 + $0x28] sm:$0xf]
        %v1311 = vld [vmem:[%s5 + $0x2c] sm:$0xf]
        %v1312 = vld [vmem:[%s5 + $0x30] sm:$0xf]
        %v1313 = vld [vmem:[%s5 + $0x34] sm:$0xf]
        %v1314 = vld [vmem:[%s5 + $0x38] sm:$0xf]
        %v1315 = vld [vmem:[%s5 + $0x3c] sm:$0xf]
        %v1316 = vld [vmem:[%s5 + $0x40] sm:$0xf]
        %v1317 = vld [vmem:[%s5 + $0x44] sm:$0xf]
        %v1318 = vld [vmem:[%s5 + $0x48] sm:$0xf]
        %v1319 = vld [vmem:[%s5 + $0x4c] sm:$0xf]
        %v1320 = vld [vmem:[%s5 + $0x50] sm:$0xf]
        %v1321 = vld [vmem:[%s5 + $0x54] sm:$0xf]
        %v1322 = vld [vmem:[%s5 + $0x58] sm:$0xf]
        %v1323 = vld [vmem:[%s5 + $0x5c] sm:$0xf]
        %v1324 = vld [vmem:[%s5 + $0x60] sm:$0xf]
        %v1325 = vld [vmem:[%s5 + $0x64] sm:$0xf]
        %v1326 = vld [vmem:[%s5 + $0x68] sm:$0xf]
        %v1327 = vld [vmem:[%s5 + $0x6c] sm:$0xf]
        %v1328 = vld [vmem:[%s5 + $0x70] sm:$0xf]
        %v1329 = vld [vmem:[%s5 + $0x74] sm:$0xf]
        %v1330 = vld [vmem:[%s5 + $0x78] sm:$0xf]
        %v1331 = vld [vmem:[%s5 + $0x7c] sm:$0xf]
        %v1332 = vld [vmem:[%s6] sm:$0x1]
        %v1334 = vlaneseq
        %v1335 = vshrl.u32 %v1334, 7
        %v1336 = vsub.s32 0, %v1335
        %v1337 = vrot.slane %v1332, %v1336
        %v1371 = vunpack.c.l.b16 %v1300
        %v1372 = vunpack.c.l.b16 %v1301
        %v1373 = vunpack.c.l.b16 %v1302
        %v1374 = vunpack.c.l.b16 %v1303
        %v1375 = vunpack.c.l.b16 %v1304
        %v1376 = vunpack.c.l.b16 %v1305
        %v1377 = vunpack.c.l.b16 %v1306
        %v1378 = vunpack.c.l.b16 %v1307
        %v1379 = vunpack.c.l.b16 %v1308
        %v1380 = vunpack.c.l.b16 %v1309
        %v1381 = vunpack.c.l.b16 %v1310
        %v1382 = vunpack.c.l.b16 %v1311
        %v1383 = vunpack.c.l.b16 %v1312
        %v1384 = vunpack.c.l.b16 %v1313
        %v1385 = vunpack.c.l.b16 %v1314
        %v1386 = vunpack.c.l.b16 %v1315
        %v1387 = vunpack.c.l.b16 %v1316
        %v1388 = vunpack.c.l.b16 %v1317
        %v1389 = vunpack.c.l.b16 %v1318
        %v1390 = vunpack.c.l.b16 %v1319
        %v1391 = vunpack.c.l.b16 %v1320
        %v1392 = vunpack.c.l.b16 %v1321
        %v1393 = vunpack.c.l.b16 %v1322
        %v1394 = vunpack.c.l.b16 %v1323
        %v1395 = vunpack.c.l.b16 %v1324
        %v1396 = vunpack.c.l.b16 %v1325
        %v1397 = vunpack.c.l.b16 %v1326
        %v1398 = vunpack.c.l.b16 %v1327
        %v1399 = vunpack.c.l.b16 %v1328
        %v1400 = vunpack.c.l.b16 %v1329
        %v1401 = vunpack.c.l.b16 %v1330
        %v1402 = vunpack.c.l.b16 %v1331
        %v1403 = vpack.c.b16 %v1372, %v1371
        %v1404 = vpack.c.b16 %v1374, %v1373
        %v1405 = vpack.c.b16 %v1376, %v1375
        %v1406 = vpack.c.b16 %v1378, %v1377
        %v1407 = vpack.c.b16 %v1380, %v1379
        %v1408 = vpack.c.b16 %v1382, %v1381
        %v1409 = vpack.c.b16 %v1384, %v1383
        %v1410 = vpack.c.b16 %v1386, %v1385
        %v1411 = vpack.c.b16 %v1388, %v1387
        %v1412 = vpack.c.b16 %v1390, %v1389
        %v1413 = vpack.c.b16 %v1392, %v1391
        %v1414 = vpack.c.b16 %v1394, %v1393
        %v1415 = vpack.c.b16 %v1396, %v1395
        %v1416 = vpack.c.b16 %v1398, %v1397
        %v1417 = vpack.c.b16 %v1400, %v1399
        %v1418 = vpack.c.b16 %v1402, %v1401
        %1435 = vmatprep.subr.bf16.mxu0 0
        %1436 = vmatpush1.bf16.msra.mxu0 %v1403
        %1437 = vmatprep.subr.bf16.mxu0 0
        %1438 = vmatpush1.bf16.msra.mxu0 %v1404
        %1439 = vmatprep.subr.bf16.mxu0 0
        %1440 = vmatpush1.bf16.msra.mxu0 %v1405
        %1441 = vmatprep.subr.bf16.mxu0 0
        %1442 = vmatpush1.bf16.msra.mxu0 %v1406
        %1443 = vmatprep.subr.bf16.mxu0 0
        %1444 = vmatpush1.bf16.msra.mxu0 %v1407
        %1445 = vmatprep.subr.bf16.mxu0 0
        %1446 = vmatpush1.bf16.msra.mxu0 %v1408
        %1447 = vmatprep.subr.bf16.mxu0 0
        %1448 = vmatpush1.bf16.msra.mxu0 %v1409
        %1449 = vmatprep.subr.bf16.mxu0 0
        %1450 = vmatpush1.bf16.msra.mxu0 %v1410
        %1451 = vmatprep.subr.bf16.mxu0 0
        %1452 = vmatpush1.bf16.msra.mxu0 %v1411
        %1453 = vmatprep.subr.bf16.mxu0 0
        %1454 = vmatpush1.bf16.msra.mxu0 %v1412
        %1455 = vmatprep.subr.bf16.mxu0 0
        %1456 = vmatpush1.bf16.msra.mxu0 %v1413
        %1457 = vmatprep.subr.bf16.mxu0 0
        %1458 = vmatpush1.bf16.msra.mxu0 %v1414
        %1459 = vmatprep.subr.bf16.mxu0 0
        %1460 = vmatpush1.bf16.msra.mxu0 %v1415
        %1461 = vmatprep.subr.bf16.mxu0 0
        %1462 = vmatpush1.bf16.msra.mxu0 %v1416
        %1463 = vmatprep.subr.bf16.mxu0 0
        %1464 = vmatpush1.bf16.msra.mxu0 %v1417
        %1465 = vmatprep.subr.bf16.mxu0 0
        %1466 = vmatpush1.bf16.msra.mxu0 %v1418
        %1467 = vmatprep.mubr.bf16.mxu0 %v1285
        %1468 = vmatmul.mubr.bf16.gmra.mrb[0].mxu0 %v1284
        %v1469 = vpop.f32.mrb[0].mxu0
        %v1470 = vadd.f32 %v1337, %v1469
        %v1471 = vpop.f32.mrb[0].mxu0
        %v1472 = vpop.f32.mrb[0].mxu0
        %v1473 = vadd.f32 %v1337, %v1472
        %v1474 = vpop.f32.mrb[0].mxu0
        %1475 = vmatprep.mubr.bf16.mxu0 %v1287
        %1476 = vmatmul.mubr.bf16.gmra.mrb[0].mxu0 %v1286
        %v1477 = vpop.f32.mrb[0].mxu0
        %v1478 = vadd.f32 %v1337, %v1477
        %v1479 = vpop.f32.mrb[0].mxu0
        %v1480 = vpop.f32.mrb[0].mxu0
        %v1481 = vadd.f32 %v1337, %v1480
        %v1482 = vpop.f32.mrb[0].mxu0
        %1483 = vmatprep.mubr.bf16.mxu0 %v1289
        %1484 = vmatmul.mubr.bf16.gmra.mrb[0].mxu0 %v1288
        %v1485 = vpop.f32.mrb[0].mxu0
        %v1486 = vadd.f32 %v1337, %v1485
        %v1487 = vpop.f32.mrb[0].mxu0
        %v1488 = vpop.f32.mrb[0].mxu0
        %v1489 = vadd.f32 %v1337, %v1488
        %v1490 = vpop.f32.mrb[0].mxu0
        %1491 = vmatprep.mubr.bf16.mxu0 %v1291
        %1492 = vmatmul.mubr.bf16.gmra.mrb[0].mxu0 %v1290
        %v1493 = vpop.f32.mrb[0].mxu0
        %v1494 = vadd.f32 %v1337, %v1493
        %v1495 = vpop.f32.mrb[0].mxu0
        %v1496 = vpop.f32.mrb[0].mxu0
        %v1497 = vadd.f32 %v1337, %v1496
        %v1498 = vpop.f32.mrb[0].mxu0
        %1499 = vmatprep.mubr.bf16.mxu0 %v1293
        %1500 = vmatmul.mubr.bf16.gmra.mrb[0].mxu0 %v1292
        %v1501 = vpop.f32.mrb[0].mxu0
        %v1502 = vadd.f32 %v1337, %v1501
        %v1503 = vpop.f32.mrb[0].mxu0
        %v1504 = vpop.f32.mrb[0].mxu0
        %v1505 = vadd.f32 %v1337, %v1504
        %v1506 = vpop.f32.mrb[0].mxu0
        %1507 = vmatprep.mubr.bf16.mxu0 %v1295
        %1508 = vmatmul.mubr.bf16.gmra.mrb[0].mxu0 %v1294
        %v1509 = vpop.f32.mrb[0].mxu0
        %v1510 = vadd.f32 %v1337, %v1509
        %v1511 = vpop.f32.mrb[0].mxu0
        %v1512 = vpop.f32.mrb[0].mxu0
        %v1513 = vadd.f32 %v1337, %v1512
        %v1514 = vpop.f32.mrb[0].mxu0
        %1515 = vmatprep.mubr.bf16.mxu0 %v1297
        %1516 = vmatmul.mubr.bf16.gmra.mrb[0].mxu0 %v1296
        %v1517 = vpop.f32.mrb[0].mxu0
        %v1518 = vadd.f32 %v1337, %v1517
        %v1519 = vpop.f32.mrb[0].mxu0
        %v1520 = vpop.f32.mrb[0].mxu0
        %v1521 = vadd.f32 %v1337, %v1520
        %v1522 = vpop.f32.mrb[0].mxu0
        %1523 = vmatprep.mubr.bf16.mxu0 %v1299
        %1524 = vmatmul.mubr.bf16.gmra.mrb[0].mxu0 %v1298
        %v1525 = vpop.f32.mrb[0].mxu0
        %v1526 = vadd.f32 %v1337, %v1525
        %v1527 = vpop.f32.mrb[0].mxu0
        %v1528 = vpop.f32.mrb[0].mxu0
        %v1529 = vadd.f32 %v1337, %v1528
        %v1530 = vpop.f32.mrb[0].mxu0
        %1531 = vdwg.mxu0
        %1532 = vst [vmem:[%s272] sm:$0xff] %v1470
        %1533 = vst [vmem:[%s272 + $0x8] sm:$0xff] %v1473
        %1534 = vst [vmem:[%s272 + $0x10] sm:$0xff] %v1478
        %1535 = vst [vmem:[%s272 + $0x18] sm:$0xff] %v1481
        %1536 = vst [vmem:[%s272 + $0x20] sm:$0xff] %v1486
        %1537 = vst [vmem:[%s272 + $0x28] sm:$0xff] %v1489
        %1538 = vst [vmem:[%s272 + $0x30] sm:$0xff] %v1494
        %1539 = vst [vmem:[%s272 + $0x38] sm:$0xff] %v1497
        %1540 = vst [vmem:[%s272 + $0x40] sm:$0xff] %v1502
        %1541 = vst [vmem:[%s272 + $0x48] sm:$0xff] %v1505
        %1542 = vst [vmem:[%s272 + $0x50] sm:$0xff] %v1510
        %1543 = vst [vmem:[%s272 + $0x58] sm:$0xff] %v1513
        %1544 = vst [vmem:[%s272 + $0x60] sm:$0xff] %v1518
        %1545 = vst [vmem:[%s272 + $0x68] sm:$0xff] %v1521
        %1546 = vst [vmem:[%s272 + $0x70] sm:$0xff] %v1526
        %1547 = vst [vmem:[%s272 + $0x78] sm:$0xff] %v1529
        %s1548 = sand.u32 %s181, 1
        %s1549 = scalar_lea.sflag [#allocation3], %s1548
        %s1550 = sand.u32 %s181, 1
        %s1551 = smul.addr %s1550, 128
        %s1552 = scalar_lea.vmem [#allocation2], %s1551
        // Predicated region
        $region49: #{signal_resize_encoder_forward.1} parent=47 // pred_check
          %p1553 = pneg %p191
        $region50: #{signal_resize_encoder_forward.1} parent=47 // pred_check_branch
          %1555 = sbr.rel (%p1553) target = $region52
        $region51: #{signal_resize_encoder_forward.1} parent=47 // pred_region
          %s1556 = smul.u32 16, %s21
          %s1558 = ssub.s32 2048, 2048
          %1559 = vsyncadd %s1549, %s1558
          %s1560 = smul.addr %s1556, 128
          %s1561 = scalar_lea.hbm %s7, %s1560
          %s1562 = sshll.u32 %s1552, 4
          %s1563 = int_to_ptr.vmem [resolvable:$true] %s1562
          %1568 = dma.vmem_to_hbm [thread:$0]  %s1563, 2048, %s1561, %s1549, 128, 128, 8
        $region52: #{signal_resize_encoder_forward.1} parent=47 // pred_fallthru
          _
      $region48: #{signal_resize_encoder_forward.1} parent=5 // pred_fallthru
        _
      %p1569 = scmp.le.s32.totalorder 2, %s16
      // Predicated region
      $region53: #{signal_resize_encoder_forward.1} parent=5 // pred_check
        %p1570 = pneg %p1569
      $region54: #{signal_resize_encoder_forward.1} parent=5 // pred_check_branch
        %1572 = sbr.rel (%p1570) target = $region56
      $region55: #{signal_resize_encoder_forward.1} parent=5 // pred_region
        %s1573 = ssub.s32 %s16, 2
        // Predicated region
        $region57: #{signal_resize_encoder_forward.1} parent=55 // pred_check
          %p1574 = pneg %p197
        $region58: #{signal_resize_encoder_forward.1} parent=55 // pred_check_branch
          %1576 = sbr.rel (%p1574) target = $region60
        $region59: #{signal_resize_encoder_forward.1} parent=55 // pred_region
          %s1577 = sand.u32 %s182, 1
          %s1578 = scalar_lea.sflag [#allocation3], %s1577
          %s1579 = sand.u32 %s182, 1
          %s1580 = smul.addr %s1579, 128
          %s1581 = scalar_lea.vmem [#allocation2], %s1580
          %1582 = dma.done %s1578, 2048
        $region60: #{signal_resize_encoder_forward.1} parent=55 // pred_fallthru
          _
      $region56: #{signal_resize_encoder_forward.1} parent=5 // pred_fallthru
        _
    $region6: #{signal_resize_encoder_forward.1} parent=1 // loop_footer
      %s20 = sadd.s32 1, %s16
    $region7: #{signal_resize_encoder_forward.1} parent=1 // loop_footer_branch
      %15 = sbr.rel target = $region3
    $region8: #{signal_resize_encoder_forward.1} parent=1 // loop_exit
      _
    %1583 = vsyncpa [#allocation3], 1
    %s1584 = scalar_lea.sflag [#allocation3], 1
    %1585 = vsyncpa %s1584, 1

// kernel: signal_resize_encoder_forward.1
$region0: #{signal_resize_encoder_forward.1}
  #allocation0 [shape = 'u32[]', space=smem, size = 0x4, offset = 0x4, fixed_abs, tag = 'smem constant byte address 0x4 - core index']
  #allocation1 [shape = 'u32[144,128]{1,0:T(1,128)}', space=vmem, size = 0x12000, scoped, tag = 'internal scratch']
  %s0 = inlined_call_operand.vmem [shape: f32[256,64], index: 0, kind: input, shape index: {}]
  %s1 = inlined_call_operand.vmem [shape: bf16[64,256], index: 1, kind: input, shape index: {}]
  %s2 = inlined_call_operand.vmem [shape: f32[1,256], index: 2, kind: input, shape index: {}]
  %s3 = inlined_call_operand.vmem [shape: bf16[256,256], index: 3, kind: input, shape index: {}]
  %s4 = inlined_call_operand.vmem [shape: f32[1,256], index: 4, kind: input, shape index: {}]
  %s5 = inlined_call_operand.vmem [shape: bf16[256,128], index: 5, kind: input, shape index: {}]
  %s6 = inlined_call_operand.vmem [shape: f32[1,128], index: 6, kind: input, shape index: {}]
  %s7 = inlined_call_operand.hbm [shape: f32[256,128], index: 7, kind: output, shape index: {}]
  %s8 = sld [smem:[#allocation0]]
  $region61: #{signal_resize_encoder_forward.1} parent=0
    _
  %s10 = ssub.s32 1, %s8
  %s11 = scalar_select 0, %s10, %s8
  $region1: #{signal_resize_encoder_forward.1} parent=0
    #allocation2 [shape = 'u8[131072]{0}', space=vmem, size = 0x20000, scoped, tag = 'output window, operand 0']
    #allocation3 [shape = 's32[2]{0}', space=sflag, size = 0x8, scoped, tag = 'scoped memory for signal_resize_encoder_forward.1']
    %12 = vsyncpa [#allocation3], 0
    %s13 = scalar_lea.sflag [#allocation3], 1
    %14 = vsyncpa %s13, 0
    loop: start=0, step=1, limit=4
    $region2: #{signal_resize_encoder_forward.1} parent=1 // loop_pre_header
      _
    $region3: #{signal_resize_encoder_forward.1} parent=1 // loop_header
      %s16 = sphi 0, %s20
      %p17 = scmp.ge.s32.totalorder %s16, 4
      %s26 = sphi 0, %s28
      %s29 = sphi 0, %s26
      %s30 = sphi 0, %s29
      %s46 = sphi 0, %s30
      %s50 = sphi 0, %s50
      %s52 = sphi 0, %s50
      %s53 = sphi 0, %s52
      %s67 = sphi 0, %s53
      %s71 = sphi 0, %s71
      %s73 = sphi 0, %s71
      %s74 = sphi 0, %s73
      %s88 = sphi 0, %s74
      %s92 = sphi 0, %s92
      %s94 = sphi 0, %s92
      %s95 = sphi 0, %s94
      %s109 = sphi 0, %s95
      %s113 = sphi 0, %s113
      %s115 = sphi 0, %s113
      %s116 = sphi 0, %s115
      %s130 = sphi 0, %s116
      %s134 = sphi 0, %s134
      %s136 = sphi 0, %s134
      %s137 = sphi 0, %s136
      %s151 = sphi 0, %s137
      %s155 = sphi 0, %s155
      %s157 = sphi 0, %s155
      %s158 = sphi 0, %s157
      %s172 = sphi 0, %s158
      %s178 = sphi 0, %s180
      %s181 = sphi 0, %s178
      %s182 = sphi 0, %s181
      %s198 = sphi 0, %s182
    $region4: #{signal_resize_encoder_forward.1} parent=1 // loop_header_branch
      %19 = sbr.rel (%p17) target = $region8
    $region5: #{signal_resize_encoder_forward.1} parent=1 // loop_body
      %s21 = ssub.s32 %s16, 1
      %s22 = ssub.s32 %s16, 2
      %s23 = sadd.s32 %s16, 1
      %s24 = ssub.s32 %s16, %s23
      %p25 = scmp.eq.s32.totalorder %s24, 0
      %s27 = sadd.s32 %s26, 1
      %s28 = scalar_select %p25, %s26, %s27
      %p31 = pneg %p25
      %p32 = scmp.eq.s32.totalorder %s16, 1
      %p33 = por %p31, %p32
      %p34 = scmp.ne.s32.totalorder %s26, %s29
      %p35 = scmp.eq.s32.totalorder %s16, 0
      %p36 = por %p34, %p35
      %p37 = scmp.ne.s32.totalorder %s26, %s29
      %p38 = scmp.eq.s32.totalorder %s21, 1
      %p39 = por %p37, %p38
      %p40 = scmp.ne.s32.totalorder %s29, %s30
      %p41 = scmp.eq.s32.totalorder %s21, 0
      %p42 = por %p40, %p41
      %p43 = scmp.ne.s32.totalorder %s29, %s30
      %p44 = scmp.eq.s32.totalorder %s22, 1
      %p45 = por %p43, %p44
      %p47 = scmp.ne.s32.totalorder %s30, %s46
      %p48 = scmp.eq.s32.totalorder %s22, 0
      %p49 = por %p47, %p48
      %s51 = sadd.s32 %s50, 1
      %p54 = scmp.eq.s32.totalorder %s16, 1
      %p55 = scmp.ne.s32.totalorder %s50, %s52
      %p56 = scmp.eq.s32.totalorder %s16, 0
      %p57 = por %p55, %p56
      %p58 = scmp.ne.s32.totalorder %s50, %s52
      %p59 = scmp.eq.s32.totalorder %s21, 1
      %p60 = por %p58, %p59
      %p61 = scmp.ne.s32.totalorder %s52, %s53
      %p62 = scmp.eq.s32.totalorder %s21, 0
      %p63 = por %p61, %p62
      %p64 = scmp.ne.s32.totalorder %s52, %s53
      %p65 = scmp.eq.s32.totalorder %s22, 1
      %p66 = por %p64, %p65
      %p68 = scmp.ne.s32.totalorder %s53, %s67
      %p69 = scmp.eq.s32.totalorder %s22, 0
      %p70 = por %p68, %p69
      %s72 = sadd.s32 %s71, 1
      %p75 = scmp.eq.s32.totalorder %s16, 1
      %p76 = scmp.ne.s32.totalorder %s71, %s73
      %p77 = scmp.eq.s32.totalorder %s16, 0
      %p78 = por %p76, %p77
      %p79 = scmp.ne.s32.totalorder %s71, %s73
      %p80 = scmp.eq.s32.totalorder %s21, 1
      %p81 = por %p79, %p80
      %p82 = scmp.ne.s32.totalorder %s73, %s74
      %p83 = scmp.eq.s32.totalorder %s21, 0
      %p84 = por %p82, %p83
      %p85 = scmp.ne.s32.totalorder %s73, %s74
      %p86 = scmp.eq.s32.totalorder %s22, 1
      %p87 = por %p85, %p86
      %p89 = scmp.ne.s32.totalorder %s74, %s88
      %p90 = scmp.eq.s32.totalorder %s22, 0
      %p91 = por %p89, %p90
      %s93 = sadd.s32 %s92, 1
      %p96 = scmp.eq.s32.totalorder %s16, 1
      %p97 = scmp.ne.s32.totalorder %s92, %s94
      %p98 = scmp.eq.s32.totalorder %s16, 0
      %p99 = por %p97, %p98
      %p100 = scmp.ne.s32.totalorder %s92, %s94
      %p101 = scmp.eq.s32.totalorder %s21, 1
      %p102 = por %p100, %p101
      %p103 = scmp.ne.s32.totalorder %s94, %s95
      %p104 = scmp.eq.s32.totalorder %s21, 0
      %p105 = por %p103, %p104
      %p106 = scmp.ne.s32.totalorder %s94, %s95
      %p107 = scmp.eq.s32.totalorder %s22, 1
      %p108 = por %p106, %p107
      %p110 = scmp.ne.s32.totalorder %s95, %s109
      %p111 = scmp.eq.s32.totalorder %s22, 0
      %p112 = por %p110, %p111
      %s114 = sadd.s32 %s113, 1
      %p117 = scmp.eq.s32.totalorder %s16, 1
      %p118 = scmp.ne.s32.totalorder %s113, %s115
      %p119 = scmp.eq.s32.totalorder %s16, 0
      %p120 = por %p118, %p119
      %p121 = scmp.ne.s32.totalorder %s113, %s115
      %p122 = scmp.eq.s32.totalorder %s21, 1
      %p123 = por %p121, %p122
      %p124 = scmp.ne.s32.totalorder %s115, %s116
      %p125 = scmp.eq.s32.totalorder %s21, 0
      %p126 = por %p124, %p125
      %p127 = scmp.ne.s32.totalorder %s115, %s116
      %p128 = scmp.eq.s32.totalorder %s22, 1
      %p129 = por %p127, %p128
      %p131 = scmp.ne.s32.totalorder %s116, %s130
      %p132 = scmp.eq.s32.totalorder %s22, 0
      %p133 = por %p131, %p132
      %s135 = sadd.s32 %s134, 1
      %p138 = scmp.eq.s32.totalorder %s16, 1
      %p139 = scmp.ne.s32.totalorder %s134, %s136
      %p140 = scmp.eq.s32.totalorder %s16, 0
      %p141 = por %p139, %p140
      %p142 = scmp.ne.s32.totalorder %s134, %s136
      %p143 = scmp.eq.s32.totalorder %s21, 1
      %p144 = por %p142, %p143
      %p145 = scmp.ne.s32.totalorder %s136, %s137
      %p146 = scmp.eq.s32.totalorder %s21, 0
      %p147 = por %p145, %p146
      %p148 = scmp.ne.s32.totalorder %s136, %s137
      %p149 = scmp.eq.s32.totalorder %s22, 1
      %p150 = por %p148, %p149
      %p152 = scmp.ne.s32.totalorder %s137, %s151
      %p153 = scmp.eq.s32.totalorder %s22, 0
      %p154 = por %p152, %p153
      %s156 = sadd.s32 %s155, 1
      %p159 = scmp.eq.s32.totalorder %s16, 1
      %p160 = scmp.ne.s32.totalorder %s155, %s157
      %p161 = scmp.eq.s32.totalorder %s16, 0
      %p162 = por %p160, %p161
      %p163 = scmp.ne.s32.totalorder %s155, %s157
      %p164 = scmp.eq.s32.totalorder %s21, 1
      %p165 = por %p163, %p164
      %p166 = scmp.ne.s32.totalorder %s157, %s158
      %p167 = scmp.eq.s32.totalorder %s21, 0
      %p168 = por %p166, %p167
      %p169 = scmp.ne.s32.totalorder %s157, %s158
      %p170 = scmp.eq.s32.totalorder %s22, 1
      %p171 = por %p169, %p170
      %p173 = scmp.ne.s32.totalorder %s158, %s172
      %p174 = scmp.eq.s32.totalorder %s22, 0
      %p175 = por %p173, %p174
      %s176 = ssub.s32 %s16, %s23
      %p177 = scmp.eq.s32.totalorder %s176, 0
      %s179 = sadd.s32 %s178, 1
      %s180 = scalar_select %p177, %s178, %s179
      %p183 = pneg %p177
      %p184 = scmp.eq.s32.totalorder %s16, 1
      %p185 = por %p183, %p184
      %p186 = scmp.ne.s32.totalorder %s178, %s181
      %p187 = scmp.eq.s32.totalorder %s16, 0
      %p188 = por %p186, %p187
      %p189 = scmp.ne.s32.totalorder %s178, %s181
      %p190 = scmp.eq.s32.totalorder %s21, 1
      %p191 = por %p189, %p190
      %p192 = scmp.ne.s32.totalorder %s181, %s182
      %p193 = scmp.eq.s32.totalorder %s21, 0
      %p194 = por %p192, %p193
      %p195 = scmp.ne.s32.totalorder %s181, %s182
      %p196 = scmp.eq.s32.totalorder %s22, 1
      %p197 = por %p195, %p196
      %p199 = scmp.ne.s32.totalorder %s182, %s198
      %p200 = scmp.eq.s32.totalorder %s22, 0
      %p201 = por %p199, %p200
      %p202 = scmp.le.s32.totalorder 1, %s16
      %p203 = scmp.lt.s32.totalorder %s16, 3
      %p204 = pnand %p202, %p203
      %p205 = pneg %p204
      // Predicated region
      $region9: #{signal_resize_encoder_forward.1} parent=5 // pred_check
        _
      $region10: #{signal_resize_encoder_forward.1} parent=5 // pred_check_branch
        %207 = sbr.rel (%p204) target = $region12
      $region11: #{signal_resize_encoder_forward.1} parent=5 // pred_region
        %s208 = ssub.s32 %s16, 1
        // Predicated region
        $region13: #{signal_resize_encoder_forward.1} parent=11 // pred_check
          %p209 = pneg %p63
        $region14: #{signal_resize_encoder_forward.1} parent=11 // pred_check_branch
          %211 = sbr.rel (%p209) target = $region16
        $region15: #{signal_resize_encoder_forward.1} parent=11 // pred_region
          _
        $region16: #{signal_resize_encoder_forward.1} parent=11 // pred_fallthru
          _
        // Predicated region
        $region17: #{signal_resize_encoder_forward.1} parent=11 // pred_check
          %p212 = pneg %p84
        $region18: #{signal_resize_encoder_forward.1} parent=11 // pred_check_branch
          %214 = sbr.rel (%p212) target = $region20
        $region19: #{signal_resize_encoder_forward.1} parent=11 // pred_region
          _
        $region20: #{signal_resize_encoder_forward.1} parent=11 // pred_fallthru
          _
        // Predicated region
        $region21: #{signal_resize_encoder_forward.1} parent=11 // pred_check
          %p215 = pneg %p105
        $region22: #{signal_resize_encoder_forward.1} parent=11 // pred_check_branch
          %217 = sbr.rel (%p215) target = $region24
        $region23: #{signal_resize_encoder_forward.1} parent=11 // pred_region
          _
        $region24: #{signal_resize_encoder_forward.1} parent=11 // pred_fallthru
          _
        // Predicated region
        $region25: #{signal_resize_encoder_forward.1} parent=11 // pred_check
          %p218 = pneg %p126
        $region26: #{signal_resize_encoder_forward.1} parent=11 // pred_check_branch
          %220 = sbr.rel (%p218) target = $region28
        $region27: #{signal_resize_encoder_forward.1} parent=11 // pred_region
          _
        $region28: #{signal_resize_encoder_forward.1} parent=11 // pred_fallthru
          _
        // Predicated region
        $region29: #{signal_resize_encoder_forward.1} parent=11 // pred_check
          %p221 = pneg %p147
        $region30: #{signal_resize_encoder_forward.1} parent=11 // pred_check_branch
          %223 = sbr.rel (%p221) target = $region32
        $region31: #{signal_resize_encoder_forward.1} parent=11 // pred_region
          _
        $region32: #{signal_resize_encoder_forward.1} parent=11 // pred_fallthru
          _
        // Predicated region
        $region33: #{signal_resize_encoder_forward.1} parent=11 // pred_check
          %p224 = pneg %p168
        $region34: #{signal_resize_encoder_forward.1} parent=11 // pred_check_branch
          %226 = sbr.rel (%p224) target = $region36
        $region35: #{signal_resize_encoder_forward.1} parent=11 // pred_region
          _
        $region36: #{signal_resize_encoder_forward.1} parent=11 // pred_fallthru
          _
      $region12: #{signal_resize_encoder_forward.1} parent=5 // pred_fallthru
        _
      %p227 = scmp.lt.s32.totalorder %s16, 2
      // Predicated region
      $region37: #{signal_resize_encoder_forward.1} parent=5 // pred_check
        %p228 = pneg %p227
      $region38: #{signal_resize_encoder_forward.1} parent=5 // pred_check_branch
        %230 = sbr.rel (%p228) target = $region40
      $region39: #{signal_resize_encoder_forward.1} parent=5 // pred_region
        // Predicated region
        $region41: #{signal_resize_encoder_forward.1} parent=39 // pred_check
          %p231 = pneg %p36
        $region42: #{signal_resize_encoder_forward.1} parent=39 // pred_check_branch
          %233 = sbr.rel (%p231) target = $region44
        $region43: #{signal_resize_encoder_forward.1} parent=39 // pred_region
          %s234 = smul.u32 16, %s16
          %p235 = scmp.lt.s32.totalorder %s234, 31
          %s236 = scalar_select %p235, %s234, 31
          %s237 = smul.addr %s236, 8
          %s238 = scalar_lea.vmem %s0, %s237
          %s239 = smul.u32 16, %s16
        $region44: #{signal_resize_encoder_forward.1} parent=39 // pred_fallthru
          _
      $region40: #{signal_resize_encoder_forward.1} parent=5 // pred_fallthru
        _
      %p240 = scmp.le.s32.totalorder 1, %s16
      %p241 = scmp.lt.s32.totalorder %s16, 3
      %p242 = pnand %p240, %p241
      %p243 = pneg %p242
      // Predicated region
      $region45: #{signal_resize_encoder_forward.1} parent=5 // pred_check
        _
      $region46: #{signal_resize_encoder_forward.1} parent=5 // pred_check_branch
        %245 = sbr.rel (%p242) target = $region48
      $region47: #{signal_resize_encoder_forward.1} parent=5 // pred_region
        %s246 = ssub.s32 %s16, 1
        %s247 = smul.u32 16, %s21
        %p248 = scmp.lt.s32.totalorder %s247, 31
        %s249 = scalar_select %p248, %s247, 31
        %s250 = smul.addr %s249, 8
        %s251 = scalar_lea.vmem %s0, %s250
        %p252 = pneg %p42
        %p253 = pneg %p39
        %p254 = pneg %p63
        %p255 = pneg %p60
        %p256 = pneg %p84
        %p257 = pneg %p81
        %p258 = pneg %p105
        %p259 = pneg %p102
        %p260 = pneg %p126
        %p261 = pneg %p123
        %p262 = pneg %p147
        %p263 = pneg %p144
        %p264 = pneg %p168
        %p265 = pneg %p165
        %p266 = pneg %p194
        %p267 = pneg %p191
        %s268 = sand.u32 %s181, 1
        %s269 = scalar_lea.sflag [#allocation3], %s268
        %s270 = sand.u32 %s181, 1
        %s271 = smul.addr %s270, 128
        %s272 = scalar_lea.vmem [#allocation2], %s271
        %s273 = smul.u32 16, %s21
        %p274 = scmp.lt.s32.totalorder %s273, 31
        %s275 = scalar_select %p274, %s273, 31
        %s276 = smul.addr %s275, 8
        %s277 = scalar_lea.vmem %s0, %s276
        %s278 = smul.u32 16, %s21
        %s279 = smul.u32 16, %s21
        %v281 = vld [vmem:[%s277] sm:$0xff]
        %v282 = vld [vmem:[%s277 + $0x8] sm:$0xff]
        %v283 = vld [vmem:[%s277 + $0x10] sm:$0xff]
        %v284 = vld [vmem:[%s277 + $0x18] sm:$0xff]
        %v285 = vld [vmem:[%s277 + $0x20] sm:$0xff]
        %v286 = vld [vmem:[%s277 + $0x28] sm:$0xff]
        %v287 = vld [vmem:[%s277 + $0x30] sm:$0xff]
        %v288 = vld [vmem:[%s277 + $0x38] sm:$0xff]
        %v289 = vld [vmem:[%s277 + $0x40] sm:$0xff]
        %v290 = vld [vmem:[%s277 + $0x48] sm:$0xff]
        %v291 = vld [vmem:[%s277 + $0x50] sm:$0xff]
        %v292 = vld [vmem:[%s277 + $0x58] sm:$0xff]
        %v293 = vld [vmem:[%s277 + $0x60] sm:$0xff]
        %v294 = vld [vmem:[%s277 + $0x68] sm:$0xff]
        %v295 = vld [vmem:[%s277 + $0x70] sm:$0xff]
        %v296 = vld [vmem:[%s277 + $0x78] sm:$0xff]
        %v297 = vpack.c.bf16 %v282, %v281
        %v298 = vpack.c.bf16 %v284, %v283
        %v299 = vpack.c.bf16 %v286, %v285
        %v300 = vpack.c.bf16 %v288, %v287
        %v301 = vpack.c.bf16 %v290, %v289
        %v302 = vpack.c.bf16 %v292, %v291
        %v303 = vpack.c.bf16 %v294, %v293
        %v304 = vpack.c.bf16 %v296, %v295
        %v305 = vld [vmem:[%s1] sm:$0xff]
        %v306 = vld [vmem:[%s1 + $0x8] sm:$0xff]
        %v307 = vld [vmem:[%s1 + $0x10] sm:$0xff]
        %v308 = vld [vmem:[%s1 + $0x18] sm:$0xff]
        %v309 = vld [vmem:[%s1 + $0x20] sm:$0xff]
        %v310 = vld [vmem:[%s1 + $0x28] sm:$0xff]
        %v311 = vld [vmem:[%s1 + $0x30] sm:$0xff]
        %v312 = vld [vmem:[%s1 + $0x38] sm:$0xff]
        %v313 = vld [vmem:[%s2] sm:$0x3]
        %v315 = vlaneseq
        %v316 = vshrl.u32 %v315, 7
        %v317 = vsub.s32 0, %v316
        %v318 = vrot.slane %v313, %v317
        %v319 = vlaneseq
        %v320 = vshrl.u32 %v319, 7
        %v321 = vsub.s32 1, %v320
        %v322 = vrot.slane %v313, %v321
        %v333 = vunpack.c.l.b16 %v305
        %v334 = vunpack.c.h.b16 %v305
        %v335 = vunpack.c.l.b16 %v306
        %v336 = vunpack.c.h.b16 %v306
        %v337 = vunpack.c.l.b16 %v307
        %v338 = vunpack.c.h.b16 %v307
        %v339 = vunpack.c.l.b16 %v308
        %v340 = vunpack.c.h.b16 %v308
        %v341 = vunpack.c.l.b16 %v309
        %v342 = vunpack.c.h.b16 %v309
        %v343 = vunpack.c.l.b16 %v310
        %v344 = vunpack.c.h.b16 %v310
        %v345 = vunpack.c.l.b16 %v311
        %v346 = vunpack.c.h.b16 %v311
        %v347 = vunpack.c.l.b16 %v312
        %v348 = vunpack.c.h.b16 %v312
        %v349 = vpack.c.b16 %v335, %v333
        %v350 = vpack.c.b16 %v336, %v334
        %v351 = vpack.c.b16 %v339, %v337
        %v352 = vpack.c.b16 %v340, %v338
        %v353 = vpack.c.b16 %v343, %v341
        %v354 = vpack.c.b16 %v344, %v342
        %v355 = vpack.c.b16 %v347, %v345
        %v356 = vpack.c.b16 %v348, %v346
        %vm365 = vcmask 523264
        %v367 = vsel %vm365, %v297, 0
        %v370 = vsel %vm365, %v298, 0
        %v373 = vsel %vm365, %v299, 0
        %v376 = vsel %vm365, %v300, 0
        %v379 = vsel %vm365, %v301, 0
        %v382 = vsel %vm365, %v302, 0
        %v385 = vsel %vm365, %v303, 0
        %v388 = vsel %vm365, %v304, 0
        %390 = vmatprep.subr.bf16.mxu0 %v350
        %391 = vmatpush1.bf16.msra.mxu0 %v349
        %392 = vmatprep.subr.bf16.mxu0 %v352
        %393 = vmatpush1.bf16.msra.mxu0 %v351
        %394 = vmatprep.subr.bf16.mxu0 %v354
        %395 = vmatpush1.bf16.msra.mxu0 %v353
        %396 = vmatprep.subr.bf16.mxu0 %v356
        %397 = vmatpush1.bf16.msra.mxu0 %v355
        %398 = vmatprep.subr.bf16.mxu0 0
        %399 = vmatpush1.bf16.msra.mxu0 0
        %400 = vmatprep.subr.bf16.mxu0 0
        %401 = vmatpush1.bf16.msra.mxu0 0
        %402 = vmatprep.subr.bf16.mxu0 0
        %403 = vmatpush1.bf16.msra.mxu0 0
        %404 = vmatprep.subr.bf16.mxu0 0
        %405 = vmatpush1.bf16.msra.mxu0 0
        %406 = vmatprep.subr.bf16.mxu0 0
        %407 = vmatpush1.bf16.msra.mxu0 0
        %408 = vmatprep.subr.bf16.mxu0 0
        %409 = vmatpush1.bf16.msra.mxu0 0
        %410 = vmatprep.subr.bf16.mxu0 0
        %411 = vmatpush1.bf16.msra.mxu0 0
        %412 = vmatprep.subr.bf16.mxu0 0
        %413 = vmatpush1.bf16.msra.mxu0 0
        %414 = vmatprep.subr.bf16.mxu0 0
        %415 = vmatpush1.bf16.msra.mxu0 0
        %416 = vmatprep.subr.bf16.mxu0 0
        %417 = vmatpush1.bf16.msra.mxu0 0
        %418 = vmatprep.subr.bf16.mxu0 0
        %419 = vmatpush1.bf16.msra.mxu0 0
        %420 = vmatprep.subr.bf16.mxu0 0
        %421 = vmatpush1.bf16.msra.mxu0 0
        %422 = vmatprep.mubr.bf16.mxu0 0
        %423 = vmatmul.mubr.bf16.gmra.mrb[0].mxu0 %v367
        %v424 = vpop.f32.mrb[0].mxu0
        %v425 = vadd.f32 %v318, %v424
        %v426 = vpop.f32.mrb[0].mxu0
        %v427 = vadd.f32 %v322, %v426
        %v428 = vpop.f32.mrb[0].mxu0
        %v429 = vadd.f32 %v318, %v428
        %v430 = vpop.f32.mrb[0].mxu0
        %v431 = vadd.f32 %v322, %v430
        %432 = vmatprep.mubr.bf16.mxu0 0
        %433 = vmatmul.mubr.bf16.gmra.mrb[0].mxu0 %v370
        %v434 = vpop.f32.mrb[0].mxu0
        %v435 = vadd.f32 %v318, %v434
        %v436 = vpop.f32.mrb[0].mxu0
        %v437 = vadd.f32 %v322, %v436
        %v438 = vpop.f32.mrb[0].mxu0
        %v439 = vadd.f32 %v318, %v438
        %v440 = vpop.f32.mrb[0].mxu0
        %v441 = vadd.f32 %v322, %v440
        %442 = vmatprep.mubr.bf16.mxu0 0
        %443 = vmatmul.mubr.bf16.gmra.mrb[0].mxu0 %v373
        %v444 = vpop.f32.mrb[0].mxu0
        %v445 = vadd.f32 %v318, %v444
        %v446 = vpop.f32.mrb[0].mxu0
        %v447 = vadd.f32 %v322, %v446
        %v448 = vpop.f32.mrb[0].mxu0
        %v449 = vadd.f32 %v318, %v448
        %v450 = vpop.f32.mrb[0].mxu0
        %v451 = vadd.f32 %v322, %v450
        %452 = vmatprep.mubr.bf16.mxu0 0
        %453 = vmatmul.mubr.bf16.gmra.mrb[0].mxu0 %v376
        %v454 = vpop.f32.mrb[0].mxu0
        %v455 = vadd.f32 %v318, %v454
        %v456 = vpop.f32.mrb[0].mxu0
        %v457 = vadd.f32 %v322, %v456
        %v458 = vpop.f32.mrb[0].mxu0
        %v459 = vadd.f32 %v318, %v458
        %v460 = vpop.f32.mrb[0].mxu0
        %v461 = vadd.f32 %v322, %v460
        %462 = vmatprep.mubr.bf16.mxu0 0
        %463 = vmatmul.mubr.bf16.gmra.mrb[0].mxu0 %v379
        %v464 = vpop.f32.mrb[0].mxu0
        %v465 = vadd.f32 %v318, %v464
        %v466 = vpop.f32.mrb[0].mxu0
        %v467 = vadd.f32 %v322, %v466
        %v468 = vpop.f32.mrb[0].mxu0
        %v469 = vadd.f32 %v318, %v468
        %v470 = vpop.f32.mrb[0].mxu0
        %v471 = vadd.f32 %v322, %v470
        %472 = vmatprep.mubr.bf16.mxu0 0
        %473 = vmatmul.mubr.bf16.gmra.mrb[0].mxu0 %v382
        %v474 = vpop.f32.mrb[0].mxu0
        %v475 = vadd.f32 %v318, %v474
        %v476 = vpop.f32.mrb[0].mxu0
        %v477 = vadd.f32 %v322, %v476
        %v478 = vpop.f32.mrb[0].mxu0
        %v479 = vadd.f32 %v318, %v478
        %v480 = vpop.f32.mrb[0].mxu0
        %v481 = vadd.f32 %v322, %v480
        %482 = vmatprep.mubr.bf16.mxu0 0
        %483 = vmatmul.mubr.bf16.gmra.mrb[0].mxu0 %v385
        %v484 = vpop.f32.mrb[0].mxu0
        %v485 = vadd.f32 %v318, %v484
        %v486 = vpop.f32.mrb[0].mxu0
        %v487 = vadd.f32 %v322, %v486
        %v488 = vpop.f32.mrb[0].mxu0
        %v489 = vadd.f32 %v318, %v488
        %v490 = vpop.f32.mrb[0].mxu0
        %v491 = vadd.f32 %v322, %v490
        %492 = vmatprep.mubr.bf16.mxu0 0
        %493 = vmatmul.mubr.bf16.gmra.mrb[0].mxu0 %v388
        %v494 = vpop.f32.mrb[0].mxu0
        %v495 = vadd.f32 %v318, %v494
        %v496 = vpop.f32.mrb[0].mxu0
        %v497 = vadd.f32 %v322, %v496
        %v498 = vpop.f32.mrb[0].mxu0
        %v499 = vadd.f32 %v318, %v498
        %v500 = vpop.f32.mrb[0].mxu0
        %v501 = vadd.f32 %v322, %v500
        %502 = vdwg.mxu0
        %v503 = vxor.u32 %v425, 2147483648
        %v504 = vxor.u32 %v427, 2147483648
        %v505 = vxor.u32 %v429, 2147483648
        %v506 = vxor.u32 %v431, 2147483648
        %v507 = vxor.u32 %v435, 2147483648
        %v508 = vxor.u32 %v437, 2147483648
        %v509 = vxor.u32 %v439, 2147483648
        %v510 = vxor.u32 %v441, 2147483648
        %v511 = vxor.u32 %v445, 2147483648
        %v512 = vxor.u32 %v447, 2147483648
        %v513 = vxor.u32 %v449, 2147483648
        %v514 = vxor.u32 %v451, 2147483648
        %v515 = vxor.u32 %v455, 2147483648
        %v516 = vxor.u32 %v457, 2147483648
        %v517 = vxor.u32 %v459, 2147483648
        %v518 = vxor.u32 %v461, 2147483648
        %v519 = vxor.u32 %v465, 2147483648
        %v520 = vxor.u32 %v467, 2147483648
        %v521 = vxor.u32 %v469, 2147483648
        %v522 = vxor.u32 %v471, 2147483648
        %v523 = vxor.u32 %v475, 2147483648
        %v524 = vxor.u32 %v477, 2147483648
        %v525 = vxor.u32 %v479, 2147483648
        %v526 = vxor.u32 %v481, 2147483648
        %v527 = vxor.u32 %v485, 2147483648
        %v528 = vxor.u32 %v487, 2147483648
        %v529 = vxor.u32 %v489, 2147483648
        %v530 = vxor.u32 %v491, 2147483648
        %v531 = vxor.u32 %v495, 2147483648
        %v532 = vxor.u32 %v497, 2147483648
        %v533 = vxor.u32 %v499, 2147483648
        %v534 = vxor.u32 %v501, 2147483648
        %v535 = vmul.f32 %v503, 1.442695
        %v536 = vpow.pop %v535
        %v537 = vmul.f32 %v504, 1.442695
        %v538 = vpow.pop %v537
        %v539 = vmul.f32 %v505, 1.442695
        %v540 = vpow.pop %v539
        %v541 = vmul.f32 %v506, 1.442695
        %v542 = vpow.pop %v541
        %v543 = vmul.f32 %v507, 1.442695
        %v544 = vpow.pop %v543
        %v545 = vmul.f32 %v508, 1.442695
        %v546 = vpow.pop %v545
        %v547 = vmul.f32 %v509, 1.442695
        %v548 = vpow.pop %v547
        %v549 = vmul.f32 %v510, 1.442695
        %v550 = vpow.pop %v549
        %v551 = vmul.f32 %v511, 1.442695
        %v552 = vpow.pop %v551
        %v553 = vmul.f32 %v512, 1.442695
        %v554 = vpow.pop %v553
        %v555 = vmul.f32 %v513, 1.442695
        %v556 = vpow.pop %v555
        %v557 = vmul.f32 %v514, 1.442695
        %v558 = vpow.pop %v557
        %v559 = vmul.f32 %v515, 1.442695
        %v560 = vpow.pop %v559
        %v561 = vmul.f32 %v516, 1.442695
        %v562 = vpow.pop %v561
        %v563 = vmul.f32 %v517, 1.442695
        %v564 = vpow.pop %v563
        %v565 = vmul.f32 %v518, 1.442695
        %v566 = vpow.pop %v565
        %v567 = vmul.f32 %v519, 1.442695
        %v568 = vpow.pop %v567
        %v569 = vmul.f32 %v520, 1.442695
        %v570 = vpow.pop %v569
        %v571 = vmul.f32 %v521, 1.442695
        %v572 = vpow.pop %v571
        %v573 = vmul.f32 %v522, 1.442695
        %v574 = vpow.pop %v573
        %v575 = vmul.f32 %v523, 1.442695
        %v576 = vpow.pop %v575
        %v577 = vmul.f32 %v524, 1.442695
        %v578 = vpow.pop %v577
        %v579 = vmul.f32 %v525, 1.442695
        %v580 = vpow.pop %v579
        %v581 = vmul.f32 %v526, 1.442695
        %v582 = vpow.pop %v581
        %v583 = vmul.f32 %v527, 1.442695
        %v584 = vpow.pop %v583
        %v585 = vmul.f32 %v528, 1.442695
        %v586 = vpow.pop %v585
        %v587 = vmul.f32 %v529, 1.442695
        %v588 = vpow.pop %v587
        %v589 = vmul.f32 %v530, 1.442695
        %v590 = vpow.pop %v589
        %v591 = vmul.f32 %v531, 1.442695
        %v592 = vpow.pop %v591
        %v593 = vmul.f32 %v532, 1.442695
        %v594 = vpow.pop %v593
        %v595 = vmul.f32 %v533, 1.442695
        %v596 = vpow.pop %v595
        %v597 = vmul.f32 %v534, 1.442695
        %v598 = vpow.pop %v597
        %v599 = vadd.f32 %v536, 1.0
        %v600 = vadd.f32 %v538, 1.0
        %v601 = vadd.f32 %v540, 1.0
        %v602 = vadd.f32 %v542, 1.0
        %v603 = vadd.f32 %v544, 1.0
        %v604 = vadd.f32 %v546, 1.0
        %v605 = vadd.f32 %v548, 1.0
        %v606 = vadd.f32 %v550, 1.0
        %v607 = vadd.f32 %v552, 1.0
        %v608 = vadd.f32 %v554, 1.0
        %v609 = vadd.f32 %v556, 1.0
        %v610 = vadd.f32 %v558, 1.0
        %v611 = vadd.f32 %v560, 1.0
        %v612 = vadd.f32 %v562, 1.0
        %v613 = vadd.f32 %v564, 1.0
        %v614 = vadd.f32 %v566, 1.0
        %v615 = vadd.f32 %v568, 1.0
        %v616 = vadd.f32 %v570, 1.0
        %v617 = vadd.f32 %v572, 1.0
        %v618 = vadd.f32 %v574, 1.0
        %v619 = vadd.f32 %v576, 1.0
        %v620 = vadd.f32 %v578, 1.0
        %v621 = vadd.f32 %v580, 1.0
        %v622 = vadd.f32 %v582, 1.0
        %v623 = vadd.f32 %v584, 1.0
        %v624 = vadd.f32 %v586, 1.0
        %v625 = vadd.f32 %v588, 1.0
        %v626 = vadd.f32 %v590, 1.0
        %v627 = vadd.f32 %v592, 1.0
        %v628 = vadd.f32 %v594, 1.0
        %v629 = vadd.f32 %v596, 1.0
        %v630 = vadd.f32 %v598, 1.0
        %v631 = vrcp.pop %v599
        %v632 = vmul.f32 1.0, %v631
        %v633 = vrcp.pop %v600
        %v634 = vmul.f32 1.0, %v633
        %v635 = vrcp.pop %v601
        %v636 = vmul.f32 1.0, %v635
        %v637 = vrcp.pop %v602
        %v638 = vmul.f32 1.0, %v637
        %v639 = vrcp.pop %v603
        %v640 = vmul.f32 1.0, %v639
        %v641 = vrcp.pop %v604
        %v642 = vmul.f32 1.0, %v641
        %v643 = vrcp.pop %v605
        %v644 = vmul.f32 1.0, %v643
        %v645 = vrcp.pop %v606
        %v646 = vmul.f32 1.0, %v645
        %v647 = vrcp.pop %v607
        %v648 = vmul.f32 1.0, %v647
        %v649 = vrcp.pop %v608
        %v650 = vmul.f32 1.0, %v649
        %v651 = vrcp.pop %v609
        %v652 = vmul.f32 1.0, %v651
        %v653 = vrcp.pop %v610
        %v654 = vmul.f32 1.0, %v653
        %v655 = vrcp.pop %v611
        %v656 = vmul.f32 1.0, %v655
        %v657 = vrcp.pop %v612
        %v658 = vmul.f32 1.0, %v657
        %v659 = vrcp.pop %v613
        %v660 = vmul.f32 1.0, %v659
        %v661 = vrcp.pop %v614
        %v662 = vmul.f32 1.0, %v661
        %v663 = vrcp.pop %v615
        %v664 = vmul.f32 1.0, %v663
        %v665 = vrcp.pop %v616
        %v666 = vmul.f32 1.0, %v665
        %v667 = vrcp.pop %v617
        %v668 = vmul.f32 1.0, %v667
        %v669 = vrcp.pop %v618
        %v670 = vmul.f32 1.0, %v669
        %v671 = vrcp.pop %v619
        %v672 = vmul.f32 1.0, %v671
        %v673 = vrcp.pop %v620
        %v674 = vmul.f32 1.0, %v673
        %v675 = vrcp.pop %v621
        %v676 = vmul.f32 1.0, %v675
        %v677 = vrcp.pop %v622
        %v678 = vmul.f32 1.0, %v677
        %v679 = vrcp.pop %v623
        %v680 = vmul.f32 1.0, %v679
        %v681 = vrcp.pop %v624
        %v682 = vmul.f32 1.0, %v681
        %v683 = vrcp.pop %v625
        %v684 = vmul.f32 1.0, %v683
        %v685 = vrcp.pop %v626
        %v686 = vmul.f32 1.0, %v685
        %v687 = vrcp.pop %v627
        %v688 = vmul.f32 1.0, %v687
        %v689 = vrcp.pop %v628
        %v690 = vmul.f32 1.0, %v689
        %v691 = vrcp.pop %v629
        %v692 = vmul.f32 1.0, %v691
        %v693 = vrcp.pop %v630
        %v694 = vmul.f32 1.0, %v693
        %v695 = vmul.f32 %v425, %v632
        %v696 = vmul.f32 %v427, %v634
        %v697 = vmul.f32 %v429, %v636
        %v698 = vmul.f32 %v431, %v638
        %v699 = vmul.f32 %v435, %v640
        %v700 = vmul.f32 %v437, %v642
        %v701 = vmul.f32 %v439, %v644
        %v702 = vmul.f32 %v441, %v646
        %v703 = vmul.f32 %v445, %v648
        %v704 = vmul.f32 %v447, %v650
        %v705 = vmul.f32 %v449, %v652
        %v706 = vmul.f32 %v451, %v654
        %v707 = vmul.f32 %v455, %v656
        %v708 = vmul.f32 %v457, %v658
        %v709 = vmul.f32 %v459, %v660
        %v710 = vmul.f32 %v461, %v662
        %v711 = vmul.f32 %v465, %v664
        %v712 = vmul.f32 %v467, %v666
        %v713 = vmul.f32 %v469, %v668
        %v714 = vmul.f32 %v471, %v670
        %v715 = vmul.f32 %v475, %v672
        %v716 = vmul.f32 %v477, %v674
        %v717 = vmul.f32 %v479, %v676
        %v718 = vmul.f32 %v481, %v678
        %v719 = vmul.f32 %v485, %v680
        %v720 = vmul.f32 %v487, %v682
        %v721 = vmul.f32 %v489, %v684
        %v722 = vmul.f32 %v491, %v686
        %v723 = vmul.f32 %v495, %v688
        %v724 = vmul.f32 %v497, %v690
        %v725 = vmul.f32 %v499, %v692
        %v726 = vmul.f32 %v501, %v694
        %v727 = vpack.c.bf16 %v697, %v695
        %v728 = vpack.c.bf16 %v698, %v696
        %v729 = vpack.c.bf16 %v701, %v699
        %v730 = vpack.c.bf16 %v702, %v700
        %v731 = vpack.c.bf16 %v705, %v703
        %v732 = vpack.c.bf16 %v706, %v704
        %v733 = vpack.c.bf16 %v709, %v707
        %v734 = vpack.c.bf16 %v710, %v708
        %v735 = vpack.c.bf16 %v713, %v711
        %v736 = vpack.c.bf16 %v714, %v712
        %v737 = vpack.c.bf16 %v717, %v715
        %v738 = vpack.c.bf16 %v718, %v716
        %v739 = vpack.c.bf16 %v721, %v719
        %v740 = vpack.c.bf16 %v722, %v720
        %v741 = vpack.c.bf16 %v725, %v723
        %v742 = vpack.c.bf16 %v726, %v724
        %v743 = vld [vmem:[%s3] sm:$0xff]
        %v744 = vld [vmem:[%s3 + $0x8] sm:$0xff]
        %v745 = vld [vmem:[%s3 + $0x10] sm:$0xff]
        %v746 = vld [vmem:[%s3 + $0x18] sm:$0xff]
        %v747 = vld [vmem:[%s3 + $0x20] sm:$0xff]
        %v748 = vld [vmem:[%s3 + $0x28] sm:$0xff]
        %v749 = vld [vmem:[%s3 + $0x30] sm:$0xff]
        %v750 = vld [vmem:[%s3 + $0x38] sm:$0xff]
        %v751 = vld [vmem:[%s3 + $0x40] sm:$0xff]
        %v752 = vld [vmem:[%s3 + $0x48] sm:$0xff]
        %v753 = vld [vmem:[%s3 + $0x50] sm:$0xff]
        %v754 = vld [vmem:[%s3 + $0x58] sm:$0xff]
        %v755 = vld [vmem:[%s3 + $0x60] sm:$0xff]
        %v756 = vld [vmem:[%s3 + $0x68] sm:$0xff]
        %v757 = vld [vmem:[%s3 + $0x70] sm:$0xff]
        %v758 = vld [vmem:[%s3 + $0x78] sm:$0xff]
        %v759 = vld [vmem:[%s3 + $0x80] sm:$0xff]
        %v760 = vld [vmem:[%s3 + $0x88] sm:$0xff]
        %v761 = vld [vmem:[%s3 + $0x90] sm:$0xff]
        %v762 = vld [vmem:[%s3 + $0x98] sm:$0xff]
        %v763 = vld [vmem:[%s3 + $0xa0] sm:$0xff]
        %v764 = vld [vmem:[%s3 + $0xa8] sm:$0xff]
        %v765 = vld [vmem:[%s3 + $0xb0] sm:$0xff]
        %v766 = vld [vmem:[%s3 + $0xb8] sm:$0xff]
        %v767 = vld [vmem:[%s3 + $0xc0] sm:$0xff]
        %v768 = vld [vmem:[%s3 + $0xc8] sm:$0xff]
        %v769 = vld [vmem:[%s3 + $0xd0] sm:$0xff]
        %v770 = vld [vmem:[%s3 + $0xd8] sm:$0xff]
        %v771 = vld [vmem:[%s3 + $0xe0] sm:$0xff]
        %v772 = vld [vmem:[%s3 + $0xe8] sm:$0xff]
        %v773 = vld [vmem:[%s3 + $0xf0] sm:$0xff]
        %v774 = vld [vmem:[%s3 + $0xf8] sm:$0xff]
        %v775 = vld [vmem:[%s4] sm:$0x3]
        %v777 = vlaneseq
        %v778 = vshrl.u32 %v777, 7
        %v779 = vsub.s32 0, %v778
        %v780 = vrot.slane %v775, %v779
        %v781 = vlaneseq
        %v782 = vshrl.u32 %v781, 7
        %v783 = vsub.s32 1, %v782
        %v784 = vrot.slane %v775, %v783
        %v819 = vunpack.c.l.b16 %v743
        %v820 = vunpack.c.h.b16 %v743
        %v821 = vunpack.c.l.b16 %v744
        %v822 = vunpack.c.h.b16 %v744
        %v823 = vunpack.c.l.b16 %v745
        %v824 = vunpack.c.h.b16 %v745
        %v825 = vunpack.c.l.b16 %v746
        %v826 = vunpack.c.h.b16 %v746
        %v827 = vunpack.c.l.b16 %v747
        %v828 = vunpack.c.h.b16 %v747
        %v829 = vunpack.c.l.b16 %v748
        %v830 = vunpack.c.h.b16 %v748
        %v831 = vunpack.c.l.b16 %v749
        %v832 = vunpack.c.h.b16 %v749
        %v833 = vunpack.c.l.b16 %v750
        %v834 = vunpack.c.h.b16 %v750
        %v835 = vunpack.c.l.b16 %v751
        %v836 = vunpack.c.h.b16 %v751
        %v837 = vunpack.c.l.b16 %v752
        %v838 = vunpack.c.h.b16 %v752
        %v839 = vunpack.c.l.b16 %v753
        %v840 = vunpack.c.h.b16 %v753
        %v841 = vunpack.c.l.b16 %v754
        %v842 = vunpack.c.h.b16 %v754
        %v843 = vunpack.c.l.b16 %v755
        %v844 = vunpack.c.h.b16 %v755
        %v845 = vunpack.c.l.b16 %v756
        %v846 = vunpack.c.h.b16 %v756
        %v847 = vunpack.c.l.b16 %v757
        %v848 = vunpack.c.h.b16 %v757
        %v849 = vunpack.c.l.b16 %v758
        %v850 = vunpack.c.h.b16 %v758
        %v851 = vunpack.c.l.b16 %v759
        %v852 = vunpack.c.h.b16 %v759
        %v853 = vunpack.c.l.b16 %v760
        %v854 = vunpack.c.h.b16 %v760
        %v855 = vunpack.c.l.b16 %v761
        %v856 = vunpack.c.h.b16 %v761
        %v857 = vunpack.c.l.b16 %v762
        %v858 = vunpack.c.h.b16 %v762
        %v859 = vunpack.c.l.b16 %v763
        %v860 = vunpack.c.h.b16 %v763
        %v861 = vunpack.c.l.b16 %v764
        %v862 = vunpack.c.h.b16 %v764
        %v863 = vunpack.c.l.b16 %v765
        %v864 = vunpack.c.h.b16 %v765
        %v865 = vunpack.c.l.b16 %v766
        %v866 = vunpack.c.h.b16 %v766
        %v867 = vunpack.c.l.b16 %v767
        %v868 = vunpack.c.h.b16 %v767
        %v869 = vunpack.c.l.b16 %v768
        %v870 = vunpack.c.h.b16 %v768
        %v871 = vunpack.c.l.b16 %v769
        %v872 = vunpack.c.h.b16 %v769
        %v873 = vunpack.c.l.b16 %v770
        %v874 = vunpack.c.h.b16 %v770
        %v875 = vunpack.c.l.b16 %v771
        %v876 = vunpack.c.h.b16 %v771
        %v877 = vunpack.c.l.b16 %v772
        %v878 = vunpack.c.h.b16 %v772
        %v879 = vunpack.c.l.b16 %v773
        %v880 = vunpack.c.h.b16 %v773
        %v881 = vunpack.c.l.b16 %v774
        %v882 = vunpack.c.h.b16 %v774
        %v883 = vpack.c.b16 %v821, %v819
        %v884 = vpack.c.b16 %v822, %v820
        %v885 = vpack.c.b16 %v825, %v823
        %v886 = vpack.c.b16 %v826, %v824
        %v887 = vpack.c.b16 %v829, %v827
        %v888 = vpack.c.b16 %v830, %v828
        %v889 = vpack.c.b16 %v833, %v831
        %v890 = vpack.c.b16 %v834, %v832
        %v891 = vpack.c.b16 %v837, %v835
        %v892 = vpack.c.b16 %v838, %v836
        %v893 = vpack.c.b16 %v841, %v839
        %v894 = vpack.c.b16 %v842, %v840
        %v895 = vpack.c.b16 %v845, %v843
        %v896 = vpack.c.b16 %v846, %v844
        %v897 = vpack.c.b16 %v849, %v847
        %v898 = vpack.c.b16 %v850, %v848
        %v899 = vpack.c.b16 %v853, %v851
        %v900 = vpack.c.b16 %v854, %v852
        %v901 = vpack.c.b16 %v857, %v855
        %v902 = vpack.c.b16 %v858, %v856
        %v903 = vpack.c.b16 %v861, %v859
        %v904 = vpack.c.b16 %v862, %v860
        %v905 = vpack.c.b16 %v865, %v863
        %v906 = vpack.c.b16 %v866, %v864
        %v907 = vpack.c.b16 %v869, %v867
        %v908 = vpack.c.b16 %v870, %v868
        %v909 = vpack.c.b16 %v873, %v871
        %v910 = vpack.c.b16 %v874, %v872
        %v911 = vpack.c.b16 %v877, %v875
        %v912 = vpack.c.b16 %v878, %v876
        %v913 = vpack.c.b16 %v881, %v879
        %v914 = vpack.c.b16 %v882, %v880
        %947 = vmatprep.subr.bf16.mxu0 %v884
        %948 = vmatpush1.bf16.msra.mxu0 %v883
        %949 = vmatprep.subr.bf16.mxu0 %v886
        %950 = vmatpush1.bf16.msra.mxu0 %v885
        %951 = vmatprep.subr.bf16.mxu0 %v888
        %952 = vmatpush1.bf16.msra.mxu0 %v887
        %953 = vmatprep.subr.bf16.mxu0 %v890
        %954 = vmatpush1.bf16.msra.mxu0 %v889
        %955 = vmatprep.subr.bf16.mxu0 %v892
        %956 = vmatpush1.bf16.msra.mxu0 %v891
        %957 = vmatprep.subr.bf16.mxu0 %v894
        %958 = vmatpush1.bf16.msra.mxu0 %v893
        %959 = vmatprep.subr.bf16.mxu0 %v896
        %960 = vmatpush1.bf16.msra.mxu0 %v895
        %961 = vmatprep.subr.bf16.mxu0 %v898
        %962 = vmatpush1.bf16.msra.mxu0 %v897
        %963 = vmatprep.subr.bf16.mxu0 %v900
        %964 = vmatpush1.bf16.msra.mxu0 %v899
        %965 = vmatprep.subr.bf16.mxu0 %v902
        %966 = vmatpush1.bf16.msra.mxu0 %v901
        %967 = vmatprep.subr.bf16.mxu0 %v904
        %968 = vmatpush1.bf16.msra.mxu0 %v903
        %969 = vmatprep.subr.bf16.mxu0 %v906
        %970 = vmatpush1.bf16.msra.mxu0 %v905
        %971 = vmatprep.subr.bf16.mxu0 %v908
        %972 = vmatpush1.bf16.msra.mxu0 %v907
        %973 = vmatprep.subr.bf16.mxu0 %v910
        %974 = vmatpush1.bf16.msra.mxu0 %v909
        %975 = vmatprep.subr.bf16.mxu0 %v912
        %976 = vmatpush1.bf16.msra.mxu0 %v911
        %977 = vmatprep.subr.bf16.mxu0 %v914
        %978 = vmatpush1.bf16.msra.mxu0 %v913
        %979 = vmatprep.mubr.bf16.mxu0 %v728
        %980 = vmatmul.mubr.bf16.gmra.mrb[0].mxu0 %v727
        %v981 = vpop.f32.mrb[0].mxu0
        %v982 = vadd.f32 %v780, %v981
        %v983 = vpop.f32.mrb[0].mxu0
        %v984 = vadd.f32 %v784, %v983
        %v985 = vpop.f32.mrb[0].mxu0
        %v986 = vadd.f32 %v780, %v985
        %v987 = vpop.f32.mrb[0].mxu0
        %v988 = vadd.f32 %v784, %v987
        %989 = vmatprep.mubr.bf16.mxu0 %v730
        %990 = vmatmul.mubr.bf16.gmra.mrb[0].mxu0 %v729
        %v991 = vpop.f32.mrb[0].mxu0
        %v992 = vadd.f32 %v780, %v991
        %v993 = vpop.f32.mrb[0].mxu0
        %v994 = vadd.f32 %v784, %v993
        %v995 = vpop.f32.mrb[0].mxu0
        %v996 = vadd.f32 %v780, %v995
        %v997 = vpop.f32.mrb[0].mxu0
        %v998 = vadd.f32 %v784, %v997
        %999 = vmatprep.mubr.bf16.mxu0 %v732
        %1000 = vmatmul.mubr.bf16.gmra.mrb[0].mxu0 %v731
        %v1001 = vpop.f32.mrb[0].mxu0
        %v1002 = vadd.f32 %v780, %v1001
        %v1003 = vpop.f32.mrb[0].mxu0
        %v1004 = vadd.f32 %v784, %v1003
        %v1005 = vpop.f32.mrb[0].mxu0
        %v1006 = vadd.f32 %v780, %v1005
        %v1007 = vpop.f32.mrb[0].mxu0
        %v1008 = vadd.f32 %v784, %v1007
        %1009 = vmatprep.mubr.bf16.mxu0 %v734
        %1010 = vmatmul.mubr.bf16.gmra.mrb[0].mxu0 %v733
        %v1011 = vpop.f32.mrb[0].mxu0
        %v1012 = vadd.f32 %v780, %v1011
        %v1013 = vpop.f32.mrb[0].mxu0
        %v1014 = vadd.f32 %v784, %v1013
        %v1015 = vpop.f32.mrb[0].mxu0
        %v1016 = vadd.f32 %v780, %v1015
        %v1017 = vpop.f32.mrb[0].mxu0
        %v1018 = vadd.f32 %v784, %v1017
        %1019 = vmatprep.mubr.bf16.mxu0 %v736
        %1020 = vmatmul.mubr.bf16.gmra.mrb[0].mxu0 %v735
        %v1021 = vpop.f32.mrb[0].mxu0
        %v1022 = vadd.f32 %v780, %v1021
        %v1023 = vpop.f32.mrb[0].mxu0
        %v1024 = vadd.f32 %v784, %v1023
        %v1025 = vpop.f32.mrb[0].mxu0
        %v1026 = vadd.f32 %v780, %v1025
        %v1027 = vpop.f32.mrb[0].mxu0
        %v1028 = vadd.f32 %v784, %v1027
        %1029 = vmatprep.mubr.bf16.mxu0 %v738
        %1030 = vmatmul.mubr.bf16.gmra.mrb[0].mxu0 %v737
        %v1031 = vpop.f32.mrb[0].mxu0
        %v1032 = vadd.f32 %v780, %v1031
        %v1033 = vpop.f32.mrb[0].mxu0
        %v1034 = vadd.f32 %v784, %v1033
        %v1035 = vpop.f32.mrb[0].mxu0
        %v1036 = vadd.f32 %v780, %v1035
        %v1037 = vpop.f32.mrb[0].mxu0
        %v1038 = vadd.f32 %v784, %v1037
        %1039 = vmatprep.mubr.bf16.mxu0 %v740
        %1040 = vmatmul.mubr.bf16.gmra.mrb[0].mxu0 %v739
        %v1041 = vpop.f32.mrb[0].mxu0
        %v1042 = vadd.f32 %v780, %v1041
        %v1043 = vpop.f32.mrb[0].mxu0
        %v1044 = vadd.f32 %v784, %v1043
        %v1045 = vpop.f32.mrb[0].mxu0
        %v1046 = vadd.f32 %v780, %v1045
        %v1047 = vpop.f32.mrb[0].mxu0
        %v1048 = vadd.f32 %v784, %v1047
        %1049 = vmatprep.mubr.bf16.mxu0 %v742
        %1050 = vmatmul.mubr.bf16.gmra.mrb[0].mxu0 %v741
        %v1051 = vpop.f32.mrb[0].mxu0
        %v1052 = vadd.f32 %v780, %v1051
        %v1053 = vpop.f32.mrb[0].mxu0
        %v1054 = vadd.f32 %v784, %v1053
        %v1055 = vpop.f32.mrb[0].mxu0
        %v1056 = vadd.f32 %v780, %v1055
        %v1057 = vpop.f32.mrb[0].mxu0
        %v1058 = vadd.f32 %v784, %v1057
        %1059 = vdwg.mxu0
        %v1060 = vxor.u32 %v982, 2147483648
        %v1061 = vxor.u32 %v984, 2147483648
        %v1062 = vxor.u32 %v986, 2147483648
        %v1063 = vxor.u32 %v988, 2147483648
        %v1064 = vxor.u32 %v992, 2147483648
        %v1065 = vxor.u32 %v994, 2147483648
        %v1066 = vxor.u32 %v996, 2147483648
        %v1067 = vxor.u32 %v998, 2147483648
        %v1068 = vxor.u32 %v1002, 2147483648
        %v1069 = vxor.u32 %v1004, 2147483648
        %v1070 = vxor.u32 %v1006, 2147483648
        %v1071 = vxor.u32 %v1008, 2147483648
        %v1072 = vxor.u32 %v1012, 2147483648
        %v1073 = vxor.u32 %v1014, 2147483648
        %v1074 = vxor.u32 %v1016, 2147483648
        %v1075 = vxor.u32 %v1018, 2147483648
        %v1076 = vxor.u32 %v1022, 2147483648
        %v1077 = vxor.u32 %v1024, 2147483648
        %v1078 = vxor.u32 %v1026, 2147483648
        %v1079 = vxor.u32 %v1028, 2147483648
        %v1080 = vxor.u32 %v1032, 2147483648
        %v1081 = vxor.u32 %v1034, 2147483648
        %v1082 = vxor.u32 %v1036, 2147483648
        %v1083 = vxor.u32 %v1038, 2147483648
        %v1084 = vxor.u32 %v1042, 2147483648
        %v1085 = vxor.u32 %v1044, 2147483648
        %v1086 = vxor.u32 %v1046, 2147483648
        %v1087 = vxor.u32 %v1048, 2147483648
        %v1088 = vxor.u32 %v1052, 2147483648
        %v1089 = vxor.u32 %v1054, 2147483648
        %v1090 = vxor.u32 %v1056, 2147483648
        %v1091 = vxor.u32 %v1058, 2147483648
        %v1092 = vmul.f32 %v1060, 1.442695
        %v1093 = vpow.pop %v1092
        %v1094 = vmul.f32 %v1061, 1.442695
        %v1095 = vpow.pop %v1094
        %v1096 = vmul.f32 %v1062, 1.442695
        %v1097 = vpow.pop %v1096
        %v1098 = vmul.f32 %v1063, 1.442695
        %v1099 = vpow.pop %v1098
        %v1100 = vmul.f32 %v1064, 1.442695
        %v1101 = vpow.pop %v1100
        %v1102 = vmul.f32 %v1065, 1.442695
        %v1103 = vpow.pop %v1102
        %v1104 = vmul.f32 %v1066, 1.442695
        %v1105 = vpow.pop %v1104
        %v1106 = vmul.f32 %v1067, 1.442695
        %v1107 = vpow.pop %v1106
        %v1108 = vmul.f32 %v1068, 1.442695
        %v1109 = vpow.pop %v1108
        %v1110 = vmul.f32 %v1069, 1.442695
        %v1111 = vpow.pop %v1110
        %v1112 = vmul.f32 %v1070, 1.442695
        %v1113 = vpow.pop %v1112
        %v1114 = vmul.f32 %v1071, 1.442695
        %v1115 = vpow.pop %v1114
        %v1116 = vmul.f32 %v1072, 1.442695
        %v1117 = vpow.pop %v1116
        %v1118 = vmul.f32 %v1073, 1.442695
        %v1119 = vpow.pop %v1118
        %v1120 = vmul.f32 %v1074, 1.442695
        %v1121 = vpow.pop %v1120
        %v1122 = vmul.f32 %v1075, 1.442695
        %v1123 = vpow.pop %v1122
        %v1124 = vmul.f32 %v1076, 1.442695
        %v1125 = vpow.pop %v1124
        %v1126 = vmul.f32 %v1077, 1.442695
        %v1127 = vpow.pop %v1126
        %v1128 = vmul.f32 %v1078, 1.442695
        %v1129 = vpow.pop %v1128
        %v1130 = vmul.f32 %v1079, 1.442695
        %v1131 = vpow.pop %v1130
        %v1132 = vmul.f32 %v1080, 1.442695
        %v1133 = vpow.pop %v1132
        %v1134 = vmul.f32 %v1081, 1.442695
        %v1135 = vpow.pop %v1134
        %v1136 = vmul.f32 %v1082, 1.442695
        %v1137 = vpow.pop %v1136
        %v1138 = vmul.f32 %v1083, 1.442695
        %v1139 = vpow.pop %v1138
        %v1140 = vmul.f32 %v1084, 1.442695
        %v1141 = vpow.pop %v1140
        %v1142 = vmul.f32 %v1085, 1.442695
        %v1143 = vpow.pop %v1142
        %v1144 = vmul.f32 %v1086, 1.442695
        %v1145 = vpow.pop %v1144
        %v1146 = vmul.f32 %v1087, 1.442695
        %v1147 = vpow.pop %v1146
        %v1148 = vmul.f32 %v1088, 1.442695
        %v1149 = vpow.pop %v1148
        %v1150 = vmul.f32 %v1089, 1.442695
        %v1151 = vpow.pop %v1150
        %v1152 = vmul.f32 %v1090, 1.442695
        %v1153 = vpow.pop %v1152
        %v1154 = vmul.f32 %v1091, 1.442695
        %v1155 = vpow.pop %v1154
        %v1156 = vadd.f32 %v1093, 1.0
        %v1157 = vadd.f32 %v1095, 1.0
        %v1158 = vadd.f32 %v1097, 1.0
        %v1159 = vadd.f32 %v1099, 1.0
        %v1160 = vadd.f32 %v1101, 1.0
        %v1161 = vadd.f32 %v1103, 1.0
        %v1162 = vadd.f32 %v1105, 1.0
        %v1163 = vadd.f32 %v1107, 1.0
        %v1164 = vadd.f32 %v1109, 1.0
        %v1165 = vadd.f32 %v1111, 1.0
        %v1166 = vadd.f32 %v1113, 1.0
        %v1167 = vadd.f32 %v1115, 1.0
        %v1168 = vadd.f32 %v1117, 1.0
        %v1169 = vadd.f32 %v1119, 1.0
        %v1170 = vadd.f32 %v1121, 1.0
        %v1171 = vadd.f32 %v1123, 1.0
        %v1172 = vadd.f32 %v1125, 1.0
        %v1173 = vadd.f32 %v1127, 1.0
        %v1174 = vadd.f32 %v1129, 1.0
        %v1175 = vadd.f32 %v1131, 1.0
        %v1176 = vadd.f32 %v1133, 1.0
        %v1177 = vadd.f32 %v1135, 1.0
        %v1178 = vadd.f32 %v1137, 1.0
        %v1179 = vadd.f32 %v1139, 1.0
        %v1180 = vadd.f32 %v1141, 1.0
        %v1181 = vadd.f32 %v1143, 1.0
        %v1182 = vadd.f32 %v1145, 1.0
        %v1183 = vadd.f32 %v1147, 1.0
        %v1184 = vadd.f32 %v1149, 1.0
        %v1185 = vadd.f32 %v1151, 1.0
        %v1186 = vadd.f32 %v1153, 1.0
        %v1187 = vadd.f32 %v1155, 1.0
        %v1188 = vrcp.pop %v1156
        %v1189 = vmul.f32 1.0, %v1188
        %v1190 = vrcp.pop %v1157
        %v1191 = vmul.f32 1.0, %v1190
        %v1192 = vrcp.pop %v1158
        %v1193 = vmul.f32 1.0, %v1192
        %v1194 = vrcp.pop %v1159
        %v1195 = vmul.f32 1.0, %v1194
        %v1196 = vrcp.pop %v1160
        %v1197 = vmul.f32 1.0, %v1196
        %v1198 = vrcp.pop %v1161
        %v1199 = vmul.f32 1.0, %v1198
        %v1200 = vrcp.pop %v1162
        %v1201 = vmul.f32 1.0, %v1200
        %v1202 = vrcp.pop %v1163
        %v1203 = vmul.f32 1.0, %v1202
        %v1204 = vrcp.pop %v1164
        %v1205 = vmul.f32 1.0, %v1204
        %v1206 = vrcp.pop %v1165
        %v1207 = vmul.f32 1.0, %v1206
        %v1208 = vrcp.pop %v1166
        %v1209 = vmul.f32 1.0, %v1208
        %v1210 = vrcp.pop %v1167
        %v1211 = vmul.f32 1.0, %v1210
        %v1212 = vrcp.pop %v1168
        %v1213 = vmul.f32 1.0, %v1212
        %v1214 = vrcp.pop %v1169
        %v1215 = vmul.f32 1.0, %v1214
        %v1216 = vrcp.pop %v1170
        %v1217 = vmul.f32 1.0, %v1216
        %v1218 = vrcp.pop %v1171
        %v1219 = vmul.f32 1.0, %v1218
        %v1220 = vrcp.pop %v1172
        %v1221 = vmul.f32 1.0, %v1220
        %v1222 = vrcp.pop %v1173
        %v1223 = vmul.f32 1.0, %v1222
        %v1224 = vrcp.pop %v1174
        %v1225 = vmul.f32 1.0, %v1224
        %v1226 = vrcp.pop %v1175
        %v1227 = vmul.f32 1.0, %v1226
        %v1228 = vrcp.pop %v1176
        %v1229 = vmul.f32 1.0, %v1228
        %v1230 = vrcp.pop %v1177
        %v1231 = vmul.f32 1.0, %v1230
        %v1232 = vrcp.pop %v1178
        %v1233 = vmul.f32 1.0, %v1232
        %v1234 = vrcp.pop %v1179
        %v1235 = vmul.f32 1.0, %v1234
        %v1236 = vrcp.pop %v1180
        %v1237 = vmul.f32 1.0, %v1236
        %v1238 = vrcp.pop %v1181
        %v1239 = vmul.f32 1.0, %v1238
        %v1240 = vrcp.pop %v1182
        %v1241 = vmul.f32 1.0, %v1240
        %v1242 = vrcp.pop %v1183
        %v1243 = vmul.f32 1.0, %v1242
        %v1244 = vrcp.pop %v1184
        %v1245 = vmul.f32 1.0, %v1244
        %v1246 = vrcp.pop %v1185
        %v1247 = vmul.f32 1.0, %v1246
        %v1248 = vrcp.pop %v1186
        %v1249 = vmul.f32 1.0, %v1248
        %v1250 = vrcp.pop %v1187
        %v1251 = vmul.f32 1.0, %v1250
        %v1252 = vmul.f32 %v982, %v1189
        %v1253 = vmul.f32 %v984, %v1191
        %v1254 = vmul.f32 %v986, %v1193
        %v1255 = vmul.f32 %v988, %v1195
        %v1256 = vmul.f32 %v992, %v1197
        %v1257 = vmul.f32 %v994, %v1199
        %v1258 = vmul.f32 %v996, %v1201
        %v1259 = vmul.f32 %v998, %v1203
        %v1260 = vmul.f32 %v1002, %v1205
        %v1261 = vmul.f32 %v1004, %v1207
        %v1262 = vmul.f32 %v1006, %v1209
        %v1263 = vmul.f32 %v1008, %v1211
        %v1264 = vmul.f32 %v1012, %v1213
        %v1265 = vmul.f32 %v1014, %v1215
        %v1266 = vmul.f32 %v1016, %v1217
        %v1267 = vmul.f32 %v1018, %v1219
        %v1268 = vmul.f32 %v1022, %v1221
        %v1269 = vmul.f32 %v1024, %v1223
        %v1270 = vmul.f32 %v1026, %v1225
        %v1271 = vmul.f32 %v1028, %v1227
        %v1272 = vmul.f32 %v1032, %v1229
        %v1273 = vmul.f32 %v1034, %v1231
        %v1274 = vmul.f32 %v1036, %v1233
        %v1275 = vmul.f32 %v1038, %v1235
        %v1276 = vmul.f32 %v1042, %v1237
        %v1277 = vmul.f32 %v1044, %v1239
        %v1278 = vmul.f32 %v1046, %v1241
        %v1279 = vmul.f32 %v1048, %v1243
        %v1280 = vmul.f32 %v1052, %v1245
        %v1281 = vmul.f32 %v1054, %v1247
        %v1282 = vmul.f32 %v1056, %v1249
        %v1283 = vmul.f32 %v1058, %v1251
        %v1284 = vpack.c.bf16 %v1254, %v1252
        %v1285 = vpack.c.bf16 %v1255, %v1253
        %v1286 = vpack.c.bf16 %v1258, %v1256
        %v1287 = vpack.c.bf16 %v1259, %v1257
        %v1288 = vpack.c.bf16 %v1262, %v1260
        %v1289 = vpack.c.bf16 %v1263, %v1261
        %v1290 = vpack.c.bf16 %v1266, %v1264
        %v1291 = vpack.c.bf16 %v1267, %v1265
        %v1292 = vpack.c.bf16 %v1270, %v1268
        %v1293 = vpack.c.bf16 %v1271, %v1269
        %v1294 = vpack.c.bf16 %v1274, %v1272
        %v1295 = vpack.c.bf16 %v1275, %v1273
        %v1296 = vpack.c.bf16 %v1278, %v1276
        %v1297 = vpack.c.bf16 %v1279, %v1277
        %v1298 = vpack.c.bf16 %v1282, %v1280
        %v1299 = vpack.c.bf16 %v1283, %v1281
        %v1300 = vld [vmem:[%s5] sm:$0xf]
        %v1301 = vld [vmem:[%s5 + $0x4] sm:$0xf]
        %v1302 = vld [vmem:[%s5 + $0x8] sm:$0xf]
        %v1303 = vld [vmem:[%s5 + $0xc] sm:$0xf]
        %v1304 = vld [vmem:[%s5 + $0x10] sm:$0xf]
        %v1305 = vld [vmem:[%s5 + $0x14] sm:$0xf]
        %v1306 = vld [vmem:[%s5 + $0x18] sm:$0xf]
        %v1307 = vld [vmem:[%s5 + $0x1c] sm:$0xf]
        %v1308 = vld [vmem:[%s5 + $0x20] sm:$0xf]
        %v1309 = vld [vmem:[%s5 + $0x24] sm:$0xf]
        %v1310 = vld [vmem:[%s5 + $0x28] sm:$0xf]
        %v1311 = vld [vmem:[%s5 + $0x2c] sm:$0xf]
        %v1312 = vld [vmem:[%s5 + $0x30] sm:$0xf]
        %v1313 = vld [vmem:[%s5 + $0x34] sm:$0xf]
        %v1314 = vld [vmem:[%s5 + $0x38] sm:$0xf]
        %v1315 = vld [vmem:[%s5 + $0x3c] sm:$0xf]
        %v1316 = vld [vmem:[%s5 + $0x40] sm:$0xf]
        %v1317 = vld [vmem:[%s5 + $0x44] sm:$0xf]
        %v1318 = vld [vmem:[%s5 + $0x48] sm:$0xf]
        %v1319 = vld [vmem:[%s5 + $0x4c] sm:$0xf]
        %v1320 = vld [vmem:[%s5 + $0x50] sm:$0xf]
        %v1321 = vld [vmem:[%s5 + $0x54] sm:$0xf]
        %v1322 = vld [vmem:[%s5 + $0x58] sm:$0xf]
        %v1323 = vld [vmem:[%s5 + $0x5c] sm:$0xf]
        %v1324 = vld [vmem:[%s5 + $0x60] sm:$0xf]
        %v1325 = vld [vmem:[%s5 + $0x64] sm:$0xf]
        %v1326 = vld [vmem:[%s5 + $0x68] sm:$0xf]
        %v1327 = vld [vmem:[%s5 + $0x6c] sm:$0xf]
        %v1328 = vld [vmem:[%s5 + $0x70] sm:$0xf]
        %v1329 = vld [vmem:[%s5 + $0x74] sm:$0xf]
        %v1330 = vld [vmem:[%s5 + $0x78] sm:$0xf]
        %v1331 = vld [vmem:[%s5 + $0x7c] sm:$0xf]
        %v1332 = vld [vmem:[%s6] sm:$0x1]
        %v1334 = vlaneseq
        %v1335 = vshrl.u32 %v1334, 7
        %v1336 = vsub.s32 0, %v1335
        %v1337 = vrot.slane %v1332, %v1336
        %v1371 = vunpack.c.l.b16 %v1300
        %v1372 = vunpack.c.l.b16 %v1301
        %v1373 = vunpack.c.l.b16 %v1302
        %v1374 = vunpack.c.l.b16 %v1303
        %v1375 = vunpack.c.l.b16 %v1304
        %v1376 = vunpack.c.l.b16 %v1305
        %v1377 = vunpack.c.l.b16 %v1306
        %v1378 = vunpack.c.l.b16 %v1307
        %v1379 = vunpack.c.l.b16 %v1308
        %v1380 = vunpack.c.l.b16 %v1309
        %v1381 = vunpack.c.l.b16 %v1310
        %v1382 = vunpack.c.l.b16 %v1311
        %v1383 = vunpack.c.l.b16 %v1312
        %v1384 = vunpack.c.l.b16 %v1313
        %v1385 = vunpack.c.l.b16 %v1314
        %v1386 = vunpack.c.l.b16 %v1315
        %v1387 = vunpack.c.l.b16 %v1316
        %v1388 = vunpack.c.l.b16 %v1317
        %v1389 = vunpack.c.l.b16 %v1318
        %v1390 = vunpack.c.l.b16 %v1319
        %v1391 = vunpack.c.l.b16 %v1320
        %v1392 = vunpack.c.l.b16 %v1321
        %v1393 = vunpack.c.l.b16 %v1322
        %v1394 = vunpack.c.l.b16 %v1323
        %v1395 = vunpack.c.l.b16 %v1324
        %v1396 = vunpack.c.l.b16 %v1325
        %v1397 = vunpack.c.l.b16 %v1326
        %v1398 = vunpack.c.l.b16 %v1327
        %v1399 = vunpack.c.l.b16 %v1328
        %v1400 = vunpack.c.l.b16 %v1329
        %v1401 = vunpack.c.l.b16 %v1330
        %v1402 = vunpack.c.l.b16 %v1331
        %v1403 = vpack.c.b16 %v1372, %v1371
        %v1404 = vpack.c.b16 %v1374, %v1373
        %v1405 = vpack.c.b16 %v1376, %v1375
        %v1406 = vpack.c.b16 %v1378, %v1377
        %v1407 = vpack.c.b16 %v1380, %v1379
        %v1408 = vpack.c.b16 %v1382, %v1381
        %v1409 = vpack.c.b16 %v1384, %v1383
        %v1410 = vpack.c.b16 %v1386, %v1385
        %v1411 = vpack.c.b16 %v1388, %v1387
        %v1412 = vpack.c.b16 %v1390, %v1389
        %v1413 = vpack.c.b16 %v1392, %v1391
        %v1414 = vpack.c.b16 %v1394, %v1393
        %v1415 = vpack.c.b16 %v1396, %v1395
        %v1416 = vpack.c.b16 %v1398, %v1397
        %v1417 = vpack.c.b16 %v1400, %v1399
        %v1418 = vpack.c.b16 %v1402, %v1401
        %1435 = vmatprep.subr.bf16.mxu0 0
        %1436 = vmatpush1.bf16.msra.mxu0 %v1403
        %1437 = vmatprep.subr.bf16.mxu0 0
        %1438 = vmatpush1.bf16.msra.mxu0 %v1404
        %1439 = vmatprep.subr.bf16.mxu0 0
        %1440 = vmatpush1.bf16.msra.mxu0 %v1405
        %1441 = vmatprep.subr.bf16.mxu0 0
        %1442 = vmatpush1.bf16.msra.mxu0 %v1406
        %1443 = vmatprep.subr.bf16.mxu0 0
        %1444 = vmatpush1.bf16.msra.mxu0 %v1407
        %1445 = vmatprep.subr.bf16.mxu0 0
        %1446 = vmatpush1.bf16.msra.mxu0 %v1408
        %1447 = vmatprep.subr.bf16.mxu0 0
        %1448 = vmatpush1.bf16.msra.mxu0 %v1409
        %1449 = vmatprep.subr.bf16.mxu0 0
        %1450 = vmatpush1.bf16.msra.mxu0 %v1410
        %1451 = vmatprep.subr.bf16.mxu0 0
        %1452 = vmatpush1.bf16.msra.mxu0 %v1411
        %1453 = vmatprep.subr.bf16.mxu0 0
        %1454 = vmatpush1.bf16.msra.mxu0 %v1412
        %1455 = vmatprep.subr.bf16.mxu0 0
        %1456 = vmatpush1.bf16.msra.mxu0 %v1413
        %1457 = vmatprep.subr.bf16.mxu0 0
        %1458 = vmatpush1.bf16.msra.mxu0 %v1414
        %1459 = vmatprep.subr.bf16.mxu0 0
        %1460 = vmatpush1.bf16.msra.mxu0 %v1415
        %1461 = vmatprep.subr.bf16.mxu0 0
        %1462 = vmatpush1.bf16.msra.mxu0 %v1416
        %1463 = vmatprep.subr.bf16.mxu0 0
        %1464 = vmatpush1.bf16.msra.mxu0 %v1417
        %1465 = vmatprep.subr.bf16.mxu0 0
        %1466 = vmatpush1.bf16.msra.mxu0 %v1418
        %1467 = vmatprep.mubr.bf16.mxu0 %v1285
        %1468 = vmatmul.mubr.bf16.gmra.mrb[0].mxu0 %v1284
        %v1469 = vpop.f32.mrb[0].mxu0
        %v1470 = vadd.f32 %v1337, %v1469
        %v1471 = vpop.f32.mrb[0].mxu0
        %v1472 = vpop.f32.mrb[0].mxu0
        %v1473 = vadd.f32 %v1337, %v1472
        %v1474 = vpop.f32.mrb[0].mxu0
        %1475 = vmatprep.mubr.bf16.mxu0 %v1287
        %1476 = vmatmul.mubr.bf16.gmra.mrb[0].mxu0 %v1286
        %v1477 = vpop.f32.mrb[0].mxu0
        %v1478 = vadd.f32 %v1337, %v1477
        %v1479 = vpop.f32.mrb[0].mxu0
        %v1480 = vpop.f32.mrb[0].mxu0
        %v1481 = vadd.f32 %v1337, %v1480
        %v1482 = vpop.f32.mrb[0].mxu0
        %1483 = vmatprep.mubr.bf16.mxu0 %v1289
        %1484 = vmatmul.mubr.bf16.gmra.mrb[0].mxu0 %v1288
        %v1485 = vpop.f32.mrb[0].mxu0
        %v1486 = vadd.f32 %v1337, %v1485
        %v1487 = vpop.f32.mrb[0].mxu0
        %v1488 = vpop.f32.mrb[0].mxu0
        %v1489 = vadd.f32 %v1337, %v1488
        %v1490 = vpop.f32.mrb[0].mxu0
        %1491 = vmatprep.mubr.bf16.mxu0 %v1291
        %1492 = vmatmul.mubr.bf16.gmra.mrb[0].mxu0 %v1290
        %v1493 = vpop.f32.mrb[0].mxu0
        %v1494 = vadd.f32 %v1337, %v1493
        %v1495 = vpop.f32.mrb[0].mxu0
        %v1496 = vpop.f32.mrb[0].mxu0
        %v1497 = vadd.f32 %v1337, %v1496
        %v1498 = vpop.f32.mrb[0].mxu0
        %1499 = vmatprep.mubr.bf16.mxu0 %v1293
        %1500 = vmatmul.mubr.bf16.gmra.mrb[0].mxu0 %v1292
        %v1501 = vpop.f32.mrb[0].mxu0
        %v1502 = vadd.f32 %v1337, %v1501
        %v1503 = vpop.f32.mrb[0].mxu0
        %v1504 = vpop.f32.mrb[0].mxu0
        %v1505 = vadd.f32 %v1337, %v1504
        %v1506 = vpop.f32.mrb[0].mxu0
        %1507 = vmatprep.mubr.bf16.mxu0 %v1295
        %1508 = vmatmul.mubr.bf16.gmra.mrb[0].mxu0 %v1294
        %v1509 = vpop.f32.mrb[0].mxu0
        %v1510 = vadd.f32 %v1337, %v1509
        %v1511 = vpop.f32.mrb[0].mxu0
        %v1512 = vpop.f32.mrb[0].mxu0
        %v1513 = vadd.f32 %v1337, %v1512
        %v1514 = vpop.f32.mrb[0].mxu0
        %1515 = vmatprep.mubr.bf16.mxu0 %v1297
        %1516 = vmatmul.mubr.bf16.gmra.mrb[0].mxu0 %v1296
        %v1517 = vpop.f32.mrb[0].mxu0
        %v1518 = vadd.f32 %v1337, %v1517
        %v1519 = vpop.f32.mrb[0].mxu0
        %v1520 = vpop.f32.mrb[0].mxu0
        %v1521 = vadd.f32 %v1337, %v1520
        %v1522 = vpop.f32.mrb[0].mxu0
        %1523 = vmatprep.mubr.bf16.mxu0 %v1299
        %1524 = vmatmul.mubr.bf16.gmra.mrb[0].mxu0 %v1298
        %v1525 = vpop.f32.mrb[0].mxu0
        %v1526 = vadd.f32 %v1337, %v1525
        %v1527 = vpop.f32.mrb[0].mxu0
        %v1528 = vpop.f32.mrb[0].mxu0
        %v1529 = vadd.f32 %v1337, %v1528
        %v1530 = vpop.f32.mrb[0].mxu0
        %1531 = vdwg.mxu0
        %1532 = vst [vmem:[%s272] sm:$0xff] %v1470
        %1533 = vst [vmem:[%s272 + $0x8] sm:$0xff] %v1473
        %1534 = vst [vmem:[%s272 + $0x10] sm:$0xff] %v1478
        %1535 = vst [vmem:[%s272 + $0x18] sm:$0xff] %v1481
        %1536 = vst [vmem:[%s272 + $0x20] sm:$0xff] %v1486
        %1537 = vst [vmem:[%s272 + $0x28] sm:$0xff] %v1489
        %1538 = vst [vmem:[%s272 + $0x30] sm:$0xff] %v1494
        %1539 = vst [vmem:[%s272 + $0x38] sm:$0xff] %v1497
        %1540 = vst [vmem:[%s272 + $0x40] sm:$0xff] %v1502
        %1541 = vst [vmem:[%s272 + $0x48] sm:$0xff] %v1505
        %1542 = vst [vmem:[%s272 + $0x50] sm:$0xff] %v1510
        %1543 = vst [vmem:[%s272 + $0x58] sm:$0xff] %v1513
        %1544 = vst [vmem:[%s272 + $0x60] sm:$0xff] %v1518
        %1545 = vst [vmem:[%s272 + $0x68] sm:$0xff] %v1521
        %1546 = vst [vmem:[%s272 + $0x70] sm:$0xff] %v1526
        %1547 = vst [vmem:[%s272 + $0x78] sm:$0xff] %v1529
        %s1548 = sand.u32 %s181, 1
        %s1549 = scalar_lea.sflag [#allocation3], %s1548
        %s1550 = sand.u32 %s181, 1
        %s1551 = smul.addr %s1550, 128
        %s1552 = scalar_lea.vmem [#allocation2], %s1551
        // Predicated region
        $region49: #{signal_resize_encoder_forward.1} parent=47 // pred_check
          %p1553 = pneg %p191
        $region50: #{signal_resize_encoder_forward.1} parent=47 // pred_check_branch
          %1555 = sbr.rel (%p1553) target = $region52
        $region51: #{signal_resize_encoder_forward.1} parent=47 // pred_region
          %s1556 = smul.u32 16, %s21
          %s1558 = ssub.s32 2048, 2048
          %1559 = vsyncadd %s1549, %s1558
          %s1560 = smul.addr %s1556, 128
          %s1561 = scalar_lea.hbm %s7, %s1560
          %s1562 = sshll.u32 %s1552, 4
          %s1563 = int_to_ptr.vmem [resolvable:$true] %s1562
          %1568 = dma.vmem_to_hbm [thread:$0]  %s1563, 2048, %s1561, %s1549, 128, 128, 8
        $region52: #{signal_resize_encoder_forward.1} parent=47 // pred_fallthru
          _
      $region48: #{signal_resize_encoder_forward.1} parent=5 // pred_fallthru
        _
      %p1569 = scmp.le.s32.totalorder 2, %s16
      // Predicated region
      $region53: #{signal_resize_encoder_forward.1} parent=5 // pred_check
        %p1570 = pneg %p1569
      $region54: #{signal_resize_encoder_forward.1} parent=5 // pred_check_branch
        %1572 = sbr.rel (%p1570) target = $region56
      $region55: #{signal_resize_encoder_forward.1} parent=5 // pred_region
        %s1573 = ssub.s32 %s16, 2
        // Predicated region
        $region57: #{signal_resize_encoder_forward.1} parent=55 // pred_check
          %p1574 = pneg %p197
        $region58: #{signal_resize_encoder_forward.1} parent=55 // pred_check_branch
          %1576 = sbr.rel (%p1574) target = $region60
        $region59: #{signal_resize_encoder_forward.1} parent=55 // pred_region
          %s1577 = sand.u32 %s182, 1
          %s1578 = scalar_lea.sflag [#allocation3], %s1577
          %s1579 = sand.u32 %s182, 1
          %s1580 = smul.addr %s1579, 128
          %s1581 = scalar_lea.vmem [#allocation2], %s1580
          %1582 = dma.done %s1578, 2048
        $region60: #{signal_resize_encoder_forward.1} parent=55 // pred_fallthru
          _
      $region56: #{signal_resize_encoder_forward.1} parent=5 // pred_fallthru
        _
    $region6: #{signal_resize_encoder_forward.1} parent=1 // loop_footer
      %s20 = sadd.s32 1, %s16
    $region7: #{signal_resize_encoder_forward.1} parent=1 // loop_footer_branch
      %15 = sbr.rel target = $region3
    $region8: #{signal_resize_encoder_forward.1} parent=1 // loop_exit
      _
    %1583 = vsyncpa [#allocation3], 1
    %s1584 = scalar_lea.sflag [#allocation3], 1
    %1585 = vsyncpa %s1584, 1

</llo_original>
